<compile_context>
chip_gen: v6e
topology: v6e:2x2x1
jax: 0.10.0
libtpu: 0.0.40
codegen_flags: <defaults>
</compile_context>

<pallas_src>
import functools
import math

import jax
import jax.numpy as jnp
from jax.experimental import pallas as pl
from jax.experimental.pallas import tpu as pltpu


# ---------------------------------------------------------------------------
# Kernel: one encoder layer per grid step; grid = (batch_blocks, layer).
# ---------------------------------------------------------------------------
def _layernorm(v, w, b, eps=1e-5):
    mu = jnp.mean(v, axis=-1, keepdims=True)
    var = jnp.mean((v - mu) ** 2, axis=-1, keepdims=True)
    return (v - mu) * jax.lax.rsqrt(var + eps) * w + b


def encoder_stack_kernel(x_ref,
                         ln1_ref, wqkv_ref, bqkv_ref,
                         ln2_ref, w1_ref, b1_ref, w2_ref, b2_ref,
                         o_ref, *, n_heads, compute_dtype):
    layer = pl.program_id(1)

    BB, N, D = x_ref.shape
    M = BB * N
    dh = D // n_heads
    scale = 1.0 / math.sqrt(dh)

    # Seed the VMEM-resident residual stream at layer 0 of this batch block.
    # (Assumes f32 I/O, as in the PyTorch module, so residuals accumulate in
    #  f32 inside the output block itself; no extra scratch / per-layer copy.)
    @pl.when(layer == 0)
    def _():
        o_ref[...] = x_ref[...].astype(o_ref.dtype)

    x = o_ref[...].astype(jnp.float32).reshape(M, D)          # (M, D) f32

    # ---- sublayer 1: x = x + MHA(LN1(x)) ----------------------------------
    h = _layernorm(x, ln1_ref[0, 0:1, :], ln1_ref[0, 1:2, :])

    # Fused QKV: one (M, D) x (D, 3D) MXU matmul, f32 accumulation, fused bias.
    qkv = jnp.dot(h.astype(compute_dtype), wqkv_ref[0],
                  preferred_element_type=jnp.float32) + bqkv_ref[0]   # (M, 3D)

    q2 = qkv[:, :D].astype(compute_dtype)
    k2 = qkv[:, D:2 * D].astype(compute_dtype)
    v2 = qkv[:, 2 * D:].astype(compute_dtype)

    def gather_heads(t):                      # (M, D) -> (BB*H, N, dh)
        return jnp.stack(
            [t[g * N:(g + 1) * N, hd * dh:(hd + 1) * dh]
             for g in range(BB) for hd in range(n_heads)], axis=0)

    qh, kh, vh = gather_heads(q2), gather_heads(k2), gather_heads(v2)

    # Single batched contraction over G = BB*H groups; contraction on the last
    # (lane) dim of both operands — no explicit K transpose.
    s = jnp.einsum('gnd,gmd->gnm', qh, kh,
                   preferred_element_type=jnp.float32) * scale        # (G,N,N)
    s = s - jnp.max(s, axis=-1, keepdims=True)
    p = jnp.exp(s)                                                    # f32 exp
    p = p * pl.reciprocal(jnp.sum(p, axis=-1, keepdims=True), approx=True)
    o = jnp.einsum('gnm,gmd->gnd', p.astype(compute_dtype), vh,
                   preferred_element_type=jnp.float32)                # (G,N,dh)

    # g h n d -> (g n) (h d): merge heads back onto the lane dim.
    attn = jnp.concatenate(
        [jnp.concatenate([o[g * n_heads + hd] for hd in range(n_heads)],
                         axis=-1)
         for g in range(BB)], axis=0)                                 # (M, D)

    x = x + attn

    # ---- sublayer 2: x = x + MLP(LN2(x)) ----------------------------------
    h2 = _layernorm(x, ln2_ref[0, 0:1, :], ln2_ref[0, 1:2, :])
    z = jnp.dot(h2.astype(compute_dtype), w1_ref[0],
                preferred_element_type=jnp.float32) + b1_ref[0]        # (M, Hm)
    # exact GELU (PyTorch nn.GELU default): 0.5*z*(1+erf(z/sqrt(2)))
    z = 0.5 * z * (1.0 + jax.lax.erf(z * (1.0 / math.sqrt(2.0))))
    y = jnp.dot(z.astype(compute_dtype), w2_ref[0],
                preferred_element_type=jnp.float32) + b2_ref[0]        # (M, D)

    # Update the resident residual stream; HBM writeback happens automatically
    # only when the batch-block index changes (i.e. once per batch block).
    o_ref[...] = (x + y).reshape(BB, N, D).astype(o_ref.dtype)


# ---------------------------------------------------------------------------
# Wrapper: stack per-layer weights along a leading depth axis, fuse QKV, and
# run a single pallas_call with grid = (batch_blocks, depth).
# ---------------------------------------------------------------------------
def _vmem_capacity_bytes():
    try:
        return int(pltpu.get_tpu_info().vmem_capacity_bytes)
    except Exception:
        return 64 * 1024 * 1024     # conservative (v7x-sized) fallback


def transformer_encoder(x, layer_params, n_heads,
                        compute_dtype=jnp.bfloat16, block_batch=None):
    B, N, D = x.shape
    L = len(layer_params)
    Hm = layer_params[0]["w1"].shape[1]
    assert D % n_heads == 0

    BB = B if block_batch is None else min(block_batch, B)
    assert B % BB == 0, "block_batch must divide batch"
    nb = B // BB

    # --- stack + fuse weights (wrapper-side, one-time) ---
    ln1 = jnp.stack([jnp.concatenate([p["ln1_w"], p["ln1_b"]], axis=0)
                     for p in layer_params])                       # (L, 2, D)
    wqkv = jnp.stack([jnp.concatenate([p["wq"], p["wk"], p["wv"]], axis=1)
                      for p in layer_params])                      # (L, D, 3D)
    bqkv = jnp.stack([jnp.concatenate([p["bq"], p["bk"], p["bv"]], axis=1)
                      for p in layer_params])                      # (L, 1, 3D)
    ln2 = jnp.stack([jnp.concatenate([p["ln2_w"], p["ln2_b"]], axis=0)
                     for p in layer_params])                       # (L, 2, D)
    w1 = jnp.stack([p["w1"] for p in layer_params])                # (L, D, Hm)
    b1 = jnp.stack([p["b1"] for p in layer_params])                # (L, 1, Hm)
    w2 = jnp.stack([p["w2"] for p in layer_params])                # (L, Hm, D)
    b2 = jnp.stack([p["b2"] for p in layer_params])                # (L, 1, D)

    w_itemsize = jnp.dtype(compute_dtype).itemsize
    if compute_dtype != jnp.float32:
        # Store the big matmul weights in the compute dtype (halves weight DMA
        # and weight VMEM).  Biases / LN params stay f32.
        wqkv = wqkv.astype(compute_dtype)
        w1 = w1.astype(compute_dtype)
        w2 = w2.astype(compute_dtype)

    def wspec(arr):
        blk = (1,) + arr.shape[1:]
        return pl.BlockSpec(blk, lambda b, l: (l, 0, 0))

    # --- advisory cost estimate ---
    flops = 2 * B * L * (N * D * 3 * D + 2 * N * N * D + 2 * N * D * Hm)
    transcendentals = B * L * (n_heads * N * N + N * Hm)
    w_bytes_layer = (w_itemsize * (3 * D * D + 2 * D * Hm)
                     + 4 * (2 * D + 3 * D + 2 * D + Hm + D))
    bytes_accessed = 2 * B * N * D * 4 + nb * L * w_bytes_layer

    # --- VMEM budget (s and p coexist; head-gather copies; double-buffered
    #     weights; x + output blocks) clamped to device capacity. ---
    M = BB * N
    G = BB * n_heads
    cdt = w_itemsize
    io_bytes = 2 * 2 * (BB * N * D * 4)                    # x + out blocks (buffered)
    weight_block_bytes = w_bytes_layer
    live = (M * 3 * D * 4                                  # qkv (f32)
            + 3 * M * D * cdt                              # qh / kh / vh copies
            + 2 * G * N * N * 4 + G * N * N * cdt          # s, p (f32) + p cast
            + 2 * M * D * 4                                # o merged + attn
            + 2 * M * D * 4                                # h / residual copies
            + 2 * M * Hm * 4                               # z pre/post GELU
            + M * D * 4)                                   # y
    vmem_needed = io_bytes + 2 * weight_block_bytes + live
    cap = _vmem_capacity_bytes()
    vmem_limit = min(max(int(1.3 * vmem_needed), 32 * 1024 * 1024),
                     cap - 8 * 1024 * 1024)

    kernel = functools.partial(encoder_stack_kernel,
                               n_heads=n_heads, compute_dtype=compute_dtype)

    return pl.pallas_call(
        kernel,
        out_shape=jax.ShapeDtypeStruct((B, N, D), x.dtype),
        grid_spec=pltpu.PrefetchScalarGridSpec(
            num_scalar_prefetch=0,
            grid=(nb, L),                                   # batch blocks outer, layer inner
            in_specs=[
                pl.BlockSpec((BB, N, D), lambda b, l: (b, 0, 0)),   # x
                wspec(ln1), wspec(wqkv), wspec(bqkv),
                wspec(ln2), wspec(w1), wspec(b1), wspec(w2), wspec(b2),
            ],
            out_specs=pl.BlockSpec((BB, N, D), lambda b, l: (b, 0, 0)),
        ),
        compiler_params=pltpu.CompilerParams(
            dimension_semantics=("parallel", "arbitrary"),
            vmem_limit_bytes=int(vmem_limit),
        ),
        cost_estimate=pl.CostEstimate(flops=int(flops),
                                      transcendentals=int(transcendentals),
                                      bytes_accessed=int(bytes_accessed)),
    )(x, ln1, wqkv, bqkv, ln2, w1, b1, w2, b2)


# ---------------------------------------------------------------------------
# Pure-JAX reference (correctness check) — mirrors the PyTorch module exactly
# (note: the spec's MultiHeadAttention has no output projection).
# ---------------------------------------------------------------------------
def ref_layer(x, p, n_heads):
    D = x.shape[-1]
    d_head = D // n_heads

    def ln(v, w, b):
        mu = jnp.mean(v, axis=-1, keepdims=True)
        var = jnp.mean((v - mu) ** 2, axis=-1, keepdims=True)
        return (v - mu) / jnp.sqrt(var + 1e-5) * w[0] + b[0]

    h = ln(x, p["ln1_w"], p["ln1_b"])
    q = h @ p["wq"] + p["bq"][0]
    k = h @ p["wk"] + p["bk"][0]
    v = h @ p["wv"] + p["bv"][0]

    def split(t):  # b n (h d) -> b h n d
        B, N, _ = t.shape
        return t.reshape(B, N, n_heads, d_head).transpose(0, 2, 1, 3)

    q, k, v = split(q), split(k), split(v)
    s = jnp.einsum("bhnd,bhmd->bhnm", q, k) * d_head ** (-0.5)
    a = jax.nn.softmax(s, axis=-1)
    o = jnp.einsum("bhnm,bhmd->bhnd", a, v)
    o = o.transpose(0, 2, 1, 3).reshape(x.shape)
    x = x + o

    h2 = ln(x, p["ln2_w"], p["ln2_b"])
    z = h2 @ p["w1"] + p["b1"][0]
    z = 0.5 * z * (1.0 + jax.lax.erf(z / math.sqrt(2.0)))
    y = z @ p["w2"] + p["b2"][0]
    return x + y


# ---------------------------------------------------------------------------
# Deterministic parameter init (Linear weights stored pre-transposed (in, out);
# biases / LN params as (1, out)).
# ---------------------------------------------------------------------------
def init_params(key, dim, n_heads, mlp_dim, depth):
    layers = []
    for _ in range(depth):
        key, *ks = jax.random.split(key, 6)
        layers.append(dict(
            ln1_w=jnp.ones((1, dim), jnp.float32),
            ln1_b=jnp.zeros((1, dim), jnp.float32),
            wq=jax.random.normal(ks[0], (dim, dim), jnp.float32) * 0.02,
            bq=jnp.zeros((1, dim), jnp.float32),
            wk=jax.random.normal(ks[1], (dim, dim), jnp.float32) * 0.02,
            bk=jnp.zeros((1, dim), jnp.float32),
            wv=jax.random.normal(ks[2], (dim, dim), jnp.float32) * 0.02,
            bv=jnp.zeros((1, dim), jnp.float32),
            ln2_w=jnp.ones((1, dim), jnp.float32),
            ln2_b=jnp.zeros((1, dim), jnp.float32),
            w1=jax.random.normal(ks[3], (dim, mlp_dim), jnp.float32) * 0.02,
            b1=jnp.zeros((1, mlp_dim), jnp.float32),
            w2=jax.random.normal(ks[4], (mlp_dim, dim), jnp.float32) * 0.02,
            b2=jnp.zeros((1, dim), jnp.float32),
        ))
    return layers


if __name__ == "__main__":
    B, N, DIM, N_HEADS, MLP_DIM, DEPTH = 2, 8, 32, 4, 64, 2

    key = jax.random.PRNGKey(0)
    key, kx = jax.random.split(key)
    x = jax.random.normal(kx, (B, N, DIM), jnp.float32)
    params = init_params(key, DIM, N_HEADS, MLP_DIM, DEPTH)

    # pure-JAX reference
    ref = x
    for p in params:
        ref = ref_layer(ref, p, N_HEADS)

    # default path: bf16 matmuls (f32 accumulation / LN / softmax / residual)
    run_bf16 = jax.jit(functools.partial(transformer_encoder, n_heads=N_HEADS))
    out_bf16 = jax.block_until_ready(run_bf16(x, params))
    assert out_bf16.shape == (B, N, DIM)
    err_bf16 = float(jnp.max(jnp.abs(out_bf16 - ref)))
    assert jnp.allclose(out_bf16, ref, atol=1e-2, rtol=1e-2), err_bf16

    # f32 compute path: tight check (tolerance covers the approx EUP reciprocal)
    run_f32 = jax.jit(functools.partial(transformer_encoder, n_heads=N_HEADS,
                                        compute_dtype=jnp.float32))
    out_f32 = jax.block_until_ready(run_f32(x, params))
    err_f32 = float(jnp.max(jnp.abs(out_f32 - ref)))
    assert jnp.allclose(out_f32, ref, atol=2e-3, rtol=2e-3), err_f32

    print("KERNEL_OK")
</pallas_src>

<mosaic_0001>
module attributes {stable_mosaic.version = 11 : i64} {
  func.func @encoder_stack_kernel(%arg0: i32, %arg1: i32, %arg2: memref<2x8x32xf32, #tpu.memory_space<vmem>>, %arg3: memref<1x2x32xf32, #tpu.memory_space<vmem>>, %arg4: memref<1x32x96xbf16, #tpu.memory_space<vmem>>, %arg5: memref<1x1x96xf32, #tpu.memory_space<vmem>>, %arg6: memref<1x2x32xf32, #tpu.memory_space<vmem>>, %arg7: memref<1x32x64xbf16, #tpu.memory_space<vmem>>, %arg8: memref<1x1x64xf32, #tpu.memory_space<vmem>>, %arg9: memref<1x64x32xbf16, #tpu.memory_space<vmem>>, %arg10: memref<1x1x32xf32, #tpu.memory_space<vmem>>, %arg11: memref<2x8x32xf32, #tpu.memory_space<vmem>>) attributes {dimension_semantics = [#tpu.dimension_semantics<parallel>, #tpu.dimension_semantics<arbitrary>], iteration_bounds = array<i64: 1, 2>, scalar_prefetch = 0 : i64, scratch_operands = 0 : i64, tpu.core_type = #tpu.core_type<tc>, window_params = [{transform_indices = @transform_0, window_bounds = array<i64: 2, 8, 32>}, {transform_indices = @transform_1, window_bounds = array<i64: 1, 2, 32>}, {transform_indices = @transform_2, window_bounds = array<i64: 1, 32, 96>}, {transform_indices = @transform_3, window_bounds = array<i64: 1, 1, 96>}, {transform_indices = @transform_4, window_bounds = array<i64: 1, 2, 32>}, {transform_indices = @transform_5, window_bounds = array<i64: 1, 32, 64>}, {transform_indices = @transform_6, window_bounds = array<i64: 1, 1, 64>}, {transform_indices = @transform_7, window_bounds = array<i64: 1, 64, 32>}, {transform_indices = @transform_8, window_bounds = array<i64: 1, 1, 32>}, {transform_indices = @transform_9, window_bounds = array<i64: 2, 8, 32>}]} {
    %c0_i32 = arith.constant 0 : i32
    %0 = arith.cmpi eq, %arg1, %c0_i32 : i32
    %1 = arith.extui %0 : i1 to i32
    %c0_i32_0 = arith.constant 0 : i32
    %2 = arith.cmpi ne, %1, %c0_i32_0 : i32
    scf.if %2 {
      %c0_55 = arith.constant 0 : index
      %c0_56 = arith.constant 0 : index
      %c0_57 = arith.constant 0 : index
      %184 = vector.load %arg2[%c0_55, %c0_56, %c0_57] : memref<2x8x32xf32, #tpu.memory_space<vmem>>, vector<2x8x32xf32>
      %c0_58 = arith.constant 0 : index
      %c0_59 = arith.constant 0 : index
      %c0_60 = arith.constant 0 : index
      %185 = vector.load %arg11[%c0_58, %c0_59, %c0_60] : memref<2x8x32xf32, #tpu.memory_space<vmem>>, vector<2x8x32xf32>
      tpu.vector_store %arg11[%c0_58, %c0_59, %c0_60], %184 {strides = array<i32>} : memref<2x8x32xf32, #tpu.memory_space<vmem>>, vector<2x8x32xf32>,
    } else {
    }
    %c0 = arith.constant 0 : index
    %c0_1 = arith.constant 0 : index
    %c0_2 = arith.constant 0 : index
    %3 = vector.load %arg11[%c0, %c0_1, %c0_2] : memref<2x8x32xf32, #tpu.memory_space<vmem>>, vector<2x8x32xf32>
    %4 = vector.shape_cast %3 : vector<2x8x32xf32> to vector<16x32xf32>
    %c0_3 = arith.constant 0 : index
    %c0_4 = arith.constant 0 : index
    %c0_5 = arith.constant 0 : index
    %5 = vector.load %arg3[%c0_3, %c0_4, %c0_5] : memref<1x2x32xf32, #tpu.memory_space<vmem>>, vector<1x1x32xf32>
    %6 = vector.shape_cast %5 : vector<1x1x32xf32> to vector<1x32xf32>
    %c0_6 = arith.constant 0 : index
    %c1 = arith.constant 1 : index
    %c0_7 = arith.constant 0 : index
    %7 = vector.load %arg3[%c0_6, %c1, %c0_7] : memref<1x2x32xf32, #tpu.memory_space<vmem>>, vector<1x1x32xf32>
    %8 = vector.shape_cast %7 : vector<1x1x32xf32> to vector<1x32xf32>
    %cst = arith.constant dense<0.000000e+00> : vector<16xf32>
    %9 = vector.multi_reduction <add>, %4, %cst [1] : vector<16x32xf32> to vector<16xf32>
    %10 = vector.shape_cast %9 : vector<16xf32> to vector<16x1xf32>
    %cst_8 = arith.constant 3.200000e+01 : f32
    %11 = vector.broadcast %cst_8 : f32 to vector<16x1xf32>
    %12 = arith.divf %10, %11 : vector<16x1xf32>
    %13 = vector.broadcast %12 : vector<16x1xf32> to vector<16x32xf32>
    %14 = arith.subf %4, %13 : vector<16x32xf32>
    %15 = arith.mulf %14, %14 : vector<16x32xf32>
    %cst_9 = arith.constant dense<0.000000e+00> : vector<16xf32>
    %16 = vector.multi_reduction <add>, %15, %cst_9 [1] : vector<16x32xf32> to vector<16xf32>
    %17 = vector.shape_cast %16 : vector<16xf32> to vector<16x1xf32>
    %cst_10 = arith.constant 3.200000e+01 : f32
    %18 = vector.broadcast %cst_10 : f32 to vector<16x1xf32>
    %19 = arith.divf %17, %18 : vector<16x1xf32>
    %20 = vector.broadcast %12 : vector<16x1xf32> to vector<16x32xf32>
    %21 = arith.subf %4, %20 : vector<16x32xf32>
    %cst_11 = arith.constant 9.99999974E-6 : f32
    %22 = vector.broadcast %cst_11 : f32 to vector<16x1xf32>
    %23 = arith.addf %19, %22 : vector<16x1xf32>
    %24 = math.rsqrt %23 : vector<16x1xf32>
    %25 = vector.broadcast %24 : vector<16x1xf32> to vector<16x32xf32>
    %26 = arith.mulf %21, %25 : vector<16x32xf32>
    %27 = vector.broadcast %6 : vector<1x32xf32> to vector<16x32xf32>
    %28 = arith.mulf %26, %27 : vector<16x32xf32>
    %29 = vector.broadcast %8 : vector<1x32xf32> to vector<16x32xf32>
    %30 = arith.addf %28, %29 : vector<16x32xf32>
    %31 = arith.truncf %30 : vector<16x32xf32> to vector<16x32xbf16>
    %c0_12 = arith.constant 0 : index
    %c0_13 = arith.constant 0 : index
    %c0_14 = arith.constant 0 : index
    %32 = vector.load %arg4[%c0_12, %c0_13, %c0_14] : memref<1x32x96xbf16, #tpu.memory_space<vmem>>, vector<1x32x96xbf16>
    %33 = vector.shape_cast %32 : vector<1x32x96xbf16> to vector<32x96xbf16>
    %cst_15 = arith.constant dense<0.000000e+00> : vector<16x96xf32>
    %34 = tpu.matmul %31, %33, %cst_15 {dimension_numbers = #tpu.dot_dimension_numbers<[1], [0], [0], [1], [0, 0, 1, 1], [], []>} : vector<16x32xbf16>, vector<32x96xbf16>, vector<16x96xf32> -> vector<16x96xf32>
    %c0_16 = arith.constant 0 : index
    %c0_17 = arith.constant 0 : index
    %c0_18 = arith.constant 0 : index
    %35 = vector.load %arg5[%c0_16, %c0_17, %c0_18] : memref<1x1x96xf32, #tpu.memory_space<vmem>>, vector<1x1x96xf32>
    %36 = vector.shape_cast %35 : vector<1x1x96xf32> to vector<1x96xf32>
    %37 = vector.broadcast %36 : vector<1x96xf32> to vector<16x96xf32>
    %38 = arith.addf %34, %37 : vector<16x96xf32>
    %39 = vector.extract_strided_slice %38 {offsets = [0, 0], sizes = [16, 32], strides = [1, 1]} : vector<16x96xf32> to vector<16x32xf32>
    %40 = arith.truncf %39 : vector<16x32xf32> to vector<16x32xbf16>
    %41 = vector.extract_strided_slice %38 {offsets = [0, 32], sizes = [16, 32], strides = [1, 1]} : vector<16x96xf32> to vector<16x32xf32>
    %42 = arith.truncf %41 : vector<16x32xf32> to vector<16x32xbf16>
    %43 = vector.extract_strided_slice %38 {offsets = [0, 64], sizes = [16, 32], strides = [1, 1]} : vector<16x96xf32> to vector<16x32xf32>
    %44 = arith.truncf %43 : vector<16x32xf32> to vector<16x32xbf16>
    %45 = vector.extract_strided_slice %40 {offsets = [0, 0], sizes = [8, 8], strides = [1, 1]} : vector<16x32xbf16> to vector<8x8xbf16>
    %46 = vector.extract_strided_slice %40 {offsets = [0, 8], sizes = [8, 8], strides = [1, 1]} : vector<16x32xbf16> to vector<8x8xbf16>
    %47 = vector.extract_strided_slice %40 {offsets = [0, 16], sizes = [8, 8], strides = [1, 1]} : vector<16x32xbf16> to vector<8x8xbf16>
    %48 = vector.extract_strided_slice %40 {offsets = [0, 24], sizes = [8, 8], strides = [1, 1]} : vector<16x32xbf16> to vector<8x8xbf16>
    %49 = vector.extract_strided_slice %40 {offsets = [8, 0], sizes = [8, 8], strides = [1, 1]} : vector<16x32xbf16> to vector<8x8xbf16>
    %50 = vector.extract_strided_slice %40 {offsets = [8, 8], sizes = [8, 8], strides = [1, 1]} : vector<16x32xbf16> to vector<8x8xbf16>
    %51 = vector.extract_strided_slice %40 {offsets = [8, 16], sizes = [8, 8], strides = [1, 1]} : vector<16x32xbf16> to vector<8x8xbf16>
    %52 = vector.extract_strided_slice %40 {offsets = [8, 24], sizes = [8, 8], strides = [1, 1]} : vector<16x32xbf16> to vector<8x8xbf16>
    %53 = vector.shape_cast %45 : vector<8x8xbf16> to vector<1x8x8xbf16>
    %54 = vector.shape_cast %46 : vector<8x8xbf16> to vector<1x8x8xbf16>
    %55 = vector.shape_cast %47 : vector<8x8xbf16> to vector<1x8x8xbf16>
    %56 = vector.shape_cast %48 : vector<8x8xbf16> to vector<1x8x8xbf16>
    %57 = vector.shape_cast %49 : vector<8x8xbf16> to vector<1x8x8xbf16>
    %58 = vector.shape_cast %50 : vector<8x8xbf16> to vector<1x8x8xbf16>
    %59 = vector.shape_cast %51 : vector<8x8xbf16> to vector<1x8x8xbf16>
    %60 = vector.shape_cast %52 : vector<8x8xbf16> to vector<1x8x8xbf16>
    %61 = tpu.concatenate %53, %54, %55, %56, %57, %58, %59, %60 in 0 : vector<1x8x8xbf16>, vector<1x8x8xbf16>, vector<1x8x8xbf16>, vector<1x8x8xbf16>, vector<1x8x8xbf16>, vector<1x8x8xbf16>, vector<1x8x8xbf16>, vector<1x8x8xbf16> -> vector<8x8x8xbf16>
    %62 = vector.extract_strided_slice %42 {offsets = [0, 0], sizes = [8, 8], strides = [1, 1]} : vector<16x32xbf16> to vector<8x8xbf16>
    %63 = vector.extract_strided_slice %42 {offsets = [0, 8], sizes = [8, 8], strides = [1, 1]} : vector<16x32xbf16> to vector<8x8xbf16>
    %64 = vector.extract_strided_slice %42 {offsets = [0, 16], sizes = [8, 8], strides = [1, 1]} : vector<16x32xbf16> to vector<8x8xbf16>
    %65 = vector.extract_strided_slice %42 {offsets = [0, 24], sizes = [8, 8], strides = [1, 1]} : vector<16x32xbf16> to vector<8x8xbf16>
    %66 = vector.extract_strided_slice %42 {offsets = [8, 0], sizes = [8, 8], strides = [1, 1]} : vector<16x32xbf16> to vector<8x8xbf16>
    %67 = vector.extract_strided_slice %42 {offsets = [8, 8], sizes = [8, 8], strides = [1, 1]} : vector<16x32xbf16> to vector<8x8xbf16>
    %68 = vector.extract_strided_slice %42 {offsets = [8, 16], sizes = [8, 8], strides = [1, 1]} : vector<16x32xbf16> to vector<8x8xbf16>
    %69 = vector.extract_strided_slice %42 {offsets = [8, 24], sizes = [8, 8], strides = [1, 1]} : vector<16x32xbf16> to vector<8x8xbf16>
    %70 = vector.shape_cast %62 : vector<8x8xbf16> to vector<1x8x8xbf16>
    %71 = vector.shape_cast %63 : vector<8x8xbf16> to vector<1x8x8xbf16>
    %72 = vector.shape_cast %64 : vector<8x8xbf16> to vector<1x8x8xbf16>
    %73 = vector.shape_cast %65 : vector<8x8xbf16> to vector<1x8x8xbf16>
    %74 = vector.shape_cast %66 : vector<8x8xbf16> to vector<1x8x8xbf16>
    %75 = vector.shape_cast %67 : vector<8x8xbf16> to vector<1x8x8xbf16>
    %76 = vector.shape_cast %68 : vector<8x8xbf16> to vector<1x8x8xbf16>
    %77 = vector.shape_cast %69 : vector<8x8xbf16> to vector<1x8x8xbf16>
    %78 = tpu.concatenate %70, %71, %72, %73, %74, %75, %76, %77 in 0 : vector<1x8x8xbf16>, vector<1x8x8xbf16>, vector<1x8x8xbf16>, vector<1x8x8xbf16>, vector<1x8x8xbf16>, vector<1x8x8xbf16>, vector<1x8x8xbf16>, vector<1x8x8xbf16> -> vector<8x8x8xbf16>
    %79 = vector.extract_strided_slice %44 {offsets = [0, 0], sizes = [8, 8], strides = [1, 1]} : vector<16x32xbf16> to vector<8x8xbf16>
    %80 = vector.extract_strided_slice %44 {offsets = [0, 8], sizes = [8, 8], strides = [1, 1]} : vector<16x32xbf16> to vector<8x8xbf16>
    %81 = vector.extract_strided_slice %44 {offsets = [0, 16], sizes = [8, 8], strides = [1, 1]} : vector<16x32xbf16> to vector<8x8xbf16>
    %82 = vector.extract_strided_slice %44 {offsets = [0, 24], sizes = [8, 8], strides = [1, 1]} : vector<16x32xbf16> to vector<8x8xbf16>
    %83 = vector.extract_strided_slice %44 {offsets = [8, 0], sizes = [8, 8], strides = [1, 1]} : vector<16x32xbf16> to vector<8x8xbf16>
    %84 = vector.extract_strided_slice %44 {offsets = [8, 8], sizes = [8, 8], strides = [1, 1]} : vector<16x32xbf16> to vector<8x8xbf16>
    %85 = vector.extract_strided_slice %44 {offsets = [8, 16], sizes = [8, 8], strides = [1, 1]} : vector<16x32xbf16> to vector<8x8xbf16>
    %86 = vector.extract_strided_slice %44 {offsets = [8, 24], sizes = [8, 8], strides = [1, 1]} : vector<16x32xbf16> to vector<8x8xbf16>
    %87 = vector.shape_cast %79 : vector<8x8xbf16> to vector<1x8x8xbf16>
    %88 = vector.shape_cast %80 : vector<8x8xbf16> to vector<1x8x8xbf16>
    %89 = vector.shape_cast %81 : vector<8x8xbf16> to vector<1x8x8xbf16>
    %90 = vector.shape_cast %82 : vector<8x8xbf16> to vector<1x8x8xbf16>
    %91 = vector.shape_cast %83 : vector<8x8xbf16> to vector<1x8x8xbf16>
    %92 = vector.shape_cast %84 : vector<8x8xbf16> to vector<1x8x8xbf16>
    %93 = vector.shape_cast %85 : vector<8x8xbf16> to vector<1x8x8xbf16>
    %94 = vector.shape_cast %86 : vector<8x8xbf16> to vector<1x8x8xbf16>
    %95 = tpu.concatenate %87, %88, %89, %90, %91, %92, %93, %94 in 0 : vector<1x8x8xbf16>, vector<1x8x8xbf16>, vector<1x8x8xbf16>, vector<1x8x8xbf16>, vector<1x8x8xbf16>, vector<1x8x8xbf16>, vector<1x8x8xbf16>, vector<1x8x8xbf16> -> vector<8x8x8xbf16>
    "tpu.trace_start"() <{level = 10 : i32, message = "gnd,gmd->gnm"}> : () -> ()
    %cst_19 = arith.constant dense<0.000000e+00> : vector<8x8x8xf32>
    %96 = tpu.matmul %61, %78, %cst_19 {dimension_numbers = #tpu.dot_dimension_numbers<[2], [2], [1], [1], [0, 0, 0, 1, 1, 1], [0], [0]>} : vector<8x8x8xbf16>, vector<8x8x8xbf16>, vector<8x8x8xf32> -> vector<8x8x8xf32>
    "tpu.trace_stop"() : () -> ()
    %cst_20 = arith.constant 0.353553385 : f32
    %97 = vector.broadcast %cst_20 : f32 to vector<8x8x8xf32>
    %98 = arith.mulf %96, %97 : vector<8x8x8xf32>
    %cst_21 = arith.constant dense<0xFF800000> : vector<8x8xf32>
    %99 = vector.multi_reduction <maximumf>, %98, %cst_21 [2] : vector<8x8x8xf32> to vector<8x8xf32>
    %100 = vector.shape_cast %99 : vector<8x8xf32> to vector<8x8x1xf32>
    %101 = vector.broadcast %100 : vector<8x8x1xf32> to vector<8x8x8xf32>
    %102 = arith.subf %98, %101 : vector<8x8x8xf32>
    %103 = math.exp %102 : vector<8x8x8xf32>
    %cst_22 = arith.constant dense<0.000000e+00> : vector<8x8xf32>
    %104 = vector.multi_reduction <add>, %103, %cst_22 [2] : vector<8x8x8xf32> to vector<8x8xf32>
    %105 = vector.shape_cast %104 : vector<8x8xf32> to vector<8x8x1xf32>
    %106 = tpu.reciprocal %105 {approx = true} : vector<8x8x1xf32> -> vector<8x8x1xf32>
    %107 = vector.broadcast %106 : vector<8x8x1xf32> to vector<8x8x8xf32>
    %108 = arith.mulf %103, %107 : vector<8x8x8xf32>
    %109 = arith.truncf %108 : vector<8x8x8xf32> to vector<8x8x8xbf16>
    "tpu.trace_start"() <{level = 10 : i32, message = "gnm,gmd->gnd"}> : () -> ()
    %cst_23 = arith.constant dense<0.000000e+00> : vector<8x8x8xf32>
    %110 = tpu.matmul %109, %95, %cst_23 {dimension_numbers = #tpu.dot_dimension_numbers<[2], [1], [1], [2], [0, 0, 0, 1, 1, 2], [0], [0]>} : vector<8x8x8xbf16>, vector<8x8x8xbf16>, vector<8x8x8xf32> -> vector<8x8x8xf32>
    "tpu.trace_stop"() : () -> ()
    %111 = vector.extract_strided_slice %110 {offsets = [0, 0, 0], sizes = [1, 8, 8], strides = [1, 1, 1]} : vector<8x8x8xf32> to vector<1x8x8xf32>
    %112 = vector.shape_cast %111 : vector<1x8x8xf32> to vector<8x8xf32>
    %113 = vector.extract_strided_slice %110 {offsets = [1, 0, 0], sizes = [1, 8, 8], strides = [1, 1, 1]} : vector<8x8x8xf32> to vector<1x8x8xf32>
    %114 = vector.shape_cast %113 : vector<1x8x8xf32> to vector<8x8xf32>
    %115 = vector.extract_strided_slice %110 {offsets = [2, 0, 0], sizes = [1, 8, 8], strides = [1, 1, 1]} : vector<8x8x8xf32> to vector<1x8x8xf32>
    %116 = vector.shape_cast %115 : vector<1x8x8xf32> to vector<8x8xf32>
    %117 = vector.extract_strided_slice %110 {offsets = [3, 0, 0], sizes = [1, 8, 8], strides = [1, 1, 1]} : vector<8x8x8xf32> to vector<1x8x8xf32>
    %118 = vector.shape_cast %117 : vector<1x8x8xf32> to vector<8x8xf32>
    %119 = tpu.concatenate %112, %114, %116, %118 in 1 : vector<8x8xf32>, vector<8x8xf32>, vector<8x8xf32>, vector<8x8xf32> -> vector<8x32xf32>
    %120 = vector.extract_strided_slice %110 {offsets = [4, 0, 0], sizes = [1, 8, 8], strides = [1, 1, 1]} : vector<8x8x8xf32> to vector<1x8x8xf32>
    %121 = vector.shape_cast %120 : vector<1x8x8xf32> to vector<8x8xf32>
    %122 = vector.extract_strided_slice %110 {offsets = [5, 0, 0], sizes = [1, 8, 8], strides = [1, 1, 1]} : vector<8x8x8xf32> to vector<1x8x8xf32>
    %123 = vector.shape_cast %122 : vector<1x8x8xf32> to vector<8x8xf32>
    %124 = vector.extract_strided_slice %110 {offsets = [6, 0, 0], sizes = [1, 8, 8], strides = [1, 1, 1]} : vector<8x8x8xf32> to vector<1x8x8xf32>
    %125 = vector.shape_cast %124 : vector<1x8x8xf32> to vector<8x8xf32>
    %126 = vector.extract_strided_slice %110 {offsets = [7, 0, 0], sizes = [1, 8, 8], strides = [1, 1, 1]} : vector<8x8x8xf32> to vector<1x8x8xf32>
    %127 = vector.shape_cast %126 : vector<1x8x8xf32> to vector<8x8xf32>
    %128 = tpu.concatenate %121, %123, %125, %127 in 1 : vector<8x8xf32>, vector<8x8xf32>, vector<8x8xf32>, vector<8x8xf32> -> vector<8x32xf32>
    %129 = tpu.concatenate %119, %128 in 0 : vector<8x32xf32>, vector<8x32xf32> -> vector<16x32xf32>
    %130 = arith.addf %4, %129 : vector<16x32xf32>
    %c0_24 = arith.constant 0 : index
    %c0_25 = arith.constant 0 : index
    %c0_26 = arith.constant 0 : index
    %131 = vector.load %arg6[%c0_24, %c0_25, %c0_26] : memref<1x2x32xf32, #tpu.memory_space<vmem>>, vector<1x1x32xf32>
    %132 = vector.shape_cast %131 : vector<1x1x32xf32> to vector<1x32xf32>
    %c0_27 = arith.constant 0 : index
    %c1_28 = arith.constant 1 : index
    %c0_29 = arith.constant 0 : index
    %133 = vector.load %arg6[%c0_27, %c1_28, %c0_29] : memref<1x2x32xf32, #tpu.memory_space<vmem>>, vector<1x1x32xf32>
    %134 = vector.shape_cast %133 : vector<1x1x32xf32> to vector<1x32xf32>
    %cst_30 = arith.constant dense<0.000000e+00> : vector<16xf32>
    %135 = vector.multi_reduction <add>, %130, %cst_30 [1] : vector<16x32xf32> to vector<16xf32>
    %136 = vector.shape_cast %135 : vector<16xf32> to vector<16x1xf32>
    %cst_31 = arith.constant 3.200000e+01 : f32
    %137 = vector.broadcast %cst_31 : f32 to vector<16x1xf32>
    %138 = arith.divf %136, %137 : vector<16x1xf32>
    %139 = vector.broadcast %138 : vector<16x1xf32> to vector<16x32xf32>
    %140 = arith.subf %130, %139 : vector<16x32xf32>
    %141 = arith.mulf %140, %140 : vector<16x32xf32>
    %cst_32 = arith.constant dense<0.000000e+00> : vector<16xf32>
    %142 = vector.multi_reduction <add>, %141, %cst_32 [1] : vector<16x32xf32> to vector<16xf32>
    %143 = vector.shape_cast %142 : vector<16xf32> to vector<16x1xf32>
    %cst_33 = arith.constant 3.200000e+01 : f32
    %144 = vector.broadcast %cst_33 : f32 to vector<16x1xf32>
    %145 = arith.divf %143, %144 : vector<16x1xf32>
    %146 = vector.broadcast %138 : vector<16x1xf32> to vector<16x32xf32>
    %147 = arith.subf %130, %146 : vector<16x32xf32>
    %cst_34 = arith.constant 9.99999974E-6 : f32
    %148 = vector.broadcast %cst_34 : f32 to vector<16x1xf32>
    %149 = arith.addf %145, %148 : vector<16x1xf32>
    %150 = math.rsqrt %149 : vector<16x1xf32>
    %151 = vector.broadcast %150 : vector<16x1xf32> to vector<16x32xf32>
    %152 = arith.mulf %147, %151 : vector<16x32xf32>
    %153 = vector.broadcast %132 : vector<1x32xf32> to vector<16x32xf32>
    %154 = arith.mulf %152, %153 : vector<16x32xf32>
    %155 = vector.broadcast %134 : vector<1x32xf32> to vector<16x32xf32>
    %156 = arith.addf %154, %155 : vector<16x32xf32>
    %157 = arith.truncf %156 : vector<16x32xf32> to vector<16x32xbf16>
    %c0_35 = arith.constant 0 : index
    %c0_36 = arith.constant 0 : index
    %c0_37 = arith.constant 0 : index
    %158 = vector.load %arg7[%c0_35, %c0_36, %c0_37] : memref<1x32x64xbf16, #tpu.memory_space<vmem>>, vector<1x32x64xbf16>
    %159 = vector.shape_cast %158 : vector<1x32x64xbf16> to vector<32x64xbf16>
    %cst_38 = arith.constant dense<0.000000e+00> : vector<16x64xf32>
    %160 = tpu.matmul %157, %159, %cst_38 {dimension_numbers = #tpu.dot_dimension_numbers<[1], [0], [0], [1], [0, 0, 1, 1], [], []>} : vector<16x32xbf16>, vector<32x64xbf16>, vector<16x64xf32> -> vector<16x64xf32>
    %c0_39 = arith.constant 0 : index
    %c0_40 = arith.constant 0 : index
    %c0_41 = arith.constant 0 : index
    %161 = vector.load %arg8[%c0_39, %c0_40, %c0_41] : memref<1x1x64xf32, #tpu.memory_space<vmem>>, vector<1x1x64xf32>
    %162 = vector.shape_cast %161 : vector<1x1x64xf32> to vector<1x64xf32>
    %163 = vector.broadcast %162 : vector<1x64xf32> to vector<16x64xf32>
    %164 = arith.addf %160, %163 : vector<16x64xf32>
    %cst_42 = arith.constant 5.000000e-01 : f32
    %165 = vector.broadcast %cst_42 : f32 to vector<16x64xf32>
    %166 = arith.mulf %165, %164 : vector<16x64xf32>
    %cst_43 = arith.constant 0.707106769 : f32
    %167 = vector.broadcast %cst_43 : f32 to vector<16x64xf32>
    %168 = arith.mulf %164, %167 : vector<16x64xf32>
    %169 = math.erf %168 : vector<16x64xf32>
    %cst_44 = arith.constant 1.000000e+00 : f32
    %170 = vector.broadcast %cst_44 : f32 to vector<16x64xf32>
    %171 = arith.addf %170, %169 : vector<16x64xf32>
    %172 = arith.mulf %166, %171 : vector<16x64xf32>
    %173 = arith.truncf %172 : vector<16x64xf32> to vector<16x64xbf16>
    %c0_45 = arith.constant 0 : index
    %c0_46 = arith.constant 0 : index
    %c0_47 = arith.constant 0 : index
    %174 = vector.load %arg9[%c0_45, %c0_46, %c0_47] : memref<1x64x32xbf16, #tpu.memory_space<vmem>>, vector<1x64x32xbf16>
    %175 = vector.shape_cast %174 : vector<1x64x32xbf16> to vector<64x32xbf16>
    %cst_48 = arith.constant dense<0.000000e+00> : vector<16x32xf32>
    %176 = tpu.matmul %173, %175, %cst_48 {dimension_numbers = #tpu.dot_dimension_numbers<[1], [0], [0], [1], [0, 0, 1, 1], [], []>} : vector<16x64xbf16>, vector<64x32xbf16>, vector<16x32xf32> -> vector<16x32xf32>
    %c0_49 = arith.constant 0 : index
    %c0_50 = arith.constant 0 : index
    %c0_51 = arith.constant 0 : index
    %177 = vector.load %arg10[%c0_49, %c0_50, %c0_51] : memref<1x1x32xf32, #tpu.memory_space<vmem>>, vector<1x1x32xf32>
    %178 = vector.shape_cast %177 : vector<1x1x32xf32> to vector<1x32xf32>
    %179 = vector.broadcast %178 : vector<1x32xf32> to vector<16x32xf32>
    %180 = arith.addf %176, %179 : vector<16x32xf32>
    %181 = arith.addf %130, %180 : vector<16x32xf32>
    %182 = vector.shape_cast %181 : vector<16x32xf32> to vector<2x8x32xf32>
    %c0_52 = arith.constant 0 : index
    %c0_53 = arith.constant 0 : index
    %c0_54 = arith.constant 0 : index
    %183 = vector.load %arg11[%c0_52, %c0_53, %c0_54] : memref<2x8x32xf32, #tpu.memory_space<vmem>>, vector<2x8x32xf32>
    tpu.vector_store %arg11[%c0_52, %c0_53, %c0_54], %182 {strides = array<i32>} : memref<2x8x32xf32, #tpu.memory_space<vmem>>, vector<2x8x32xf32>,
    return
  }
  func.func @transform_0(%arg0: i32, %arg1: i32) -> (i32, i32, i32) {
    %c0_i32 = arith.constant 0 : i32
    %c0_i32_0 = arith.constant 0 : i32
    %c0_i32_1 = arith.constant 0 : i32
    return %arg0, %c0_i32, %c0_i32_0 : i32, i32, i32
  }
  func.func @transform_1(%arg0: i32, %arg1: i32) -> (i32, i32, i32) {
    %c0_i32 = arith.constant 0 : i32
    %c0_i32_0 = arith.constant 0 : i32
    %c0_i32_1 = arith.constant 0 : i32
    return %arg1, %c0_i32, %c0_i32_0 : i32, i32, i32
  }
  func.func @transform_2(%arg0: i32, %arg1: i32) -> (i32, i32, i32) {
    %c0_i32 = arith.constant 0 : i32
    %c0_i32_0 = arith.constant 0 : i32
    %c0_i32_1 = arith.constant 0 : i32
    return %arg1, %c0_i32, %c0_i32_0 : i32, i32, i32
  }
  func.func @transform_3(%arg0: i32, %arg1: i32) -> (i32, i32, i32) {
    %c0_i32 = arith.constant 0 : i32
    %c0_i32_0 = arith.constant 0 : i32
    %c0_i32_1 = arith.constant 0 : i32
    return %arg1, %c0_i32, %c0_i32_0 : i32, i32, i32
  }
  func.func @transform_4(%arg0: i32, %arg1: i32) -> (i32, i32, i32) {
    %c0_i32 = arith.constant 0 : i32
    %c0_i32_0 = arith.constant 0 : i32
    %c0_i32_1 = arith.constant 0 : i32
    return %arg1, %c0_i32, %c0_i32_0 : i32, i32, i32
  }
  func.func @transform_5(%arg0: i32, %arg1: i32) -> (i32, i32, i32) {
    %c0_i32 = arith.constant 0 : i32
    %c0_i32_0 = arith.constant 0 : i32
    %c0_i32_1 = arith.constant 0 : i32
    return %arg1, %c0_i32, %c0_i32_0 : i32, i32, i32
  }
  func.func @transform_6(%arg0: i32, %arg1: i32) -> (i32, i32, i32) {
    %c0_i32 = arith.constant 0 : i32
    %c0_i32_0 = arith.constant 0 : i32
    %c0_i32_1 = arith.constant 0 : i32
    return %arg1, %c0_i32, %c0_i32_0 : i32, i32, i32
  }
  func.func @transform_7(%arg0: i32, %arg1: i32) -> (i32, i32, i32) {
    %c0_i32 = arith.constant 0 : i32
    %c0_i32_0 = arith.constant 0 : i32
    %c0_i32_1 = arith.constant 0 : i32
    return %arg1, %c0_i32, %c0_i32_0 : i32, i32, i32
  }
  func.func @transform_8(%arg0: i32, %arg1: i32) -> (i32, i32, i32) {
    %c0_i32 = arith.constant 0 : i32
    %c0_i32_0 = arith.constant 0 : i32
    %c0_i32_1 = arith.constant 0 : i32
    return %arg1, %c0_i32, %c0_i32_0 : i32, i32, i32
  }
  func.func @transform_9(%arg0: i32, %arg1: i32) -> (i32, i32, i32) {
    %c0_i32 = arith.constant 0 : i32
    %c0_i32_0 = arith.constant 0 : i32
    %c0_i32_1 = arith.constant 0 : i32
    return %arg0, %c0_i32, %c0_i32_0 : i32, i32, i32
  }
}

</mosaic_0001>

<llo_original>
// kernel: transformer_encoder.1
$region0: #{transformer_encoder.1}
  #allocation0 [shape = 'u32[]', space=smem, size = 0x4, offset = 0x4, fixed_abs, tag = 'smem constant byte address 0x4 - core index']
  #allocation1 [shape = 'u32[144,128]{1,0:T(1,128)}', space=vmem, size = 0x12000, scoped, tag = 'internal scratch']
  %s0 = inlined_call_operand.vmem [shape: f32[2,8,32], index: 0, kind: input, shape index: {}]
  %s1 = inlined_call_operand.vmem [shape: f32[2,2,32], index: 1, kind: input, shape index: {}]
  %s2 = inlined_call_operand.vmem [shape: bf16[2,32,96], index: 2, kind: input, shape index: {}]
  %s3 = inlined_call_operand.vmem [shape: f32[2,1,96], index: 3, kind: input, shape index: {}]
  %s4 = inlined_call_operand.vmem [shape: f32[2,2,32], index: 4, kind: input, shape index: {}]
  %s5 = inlined_call_operand.vmem [shape: bf16[2,32,64], index: 5, kind: input, shape index: {}]
  %s6 = inlined_call_operand.vmem [shape: f32[2,1,64], index: 6, kind: input, shape index: {}]
  %s7 = inlined_call_operand.vmem [shape: bf16[2,64,32], index: 7, kind: input, shape index: {}]
  %s8 = inlined_call_operand.vmem [shape: f32[2,1,32], index: 8, kind: input, shape index: {}]
  %s9 = inlined_call_operand.hbm [shape: f32[2,8,32], index: 9, kind: output, shape index: {}]
  %s10 = sld [smem:[#allocation0]]
  $region73: #{transformer_encoder.1} parent=0
    _
  %s12 = ssub.s32 1, %s10
  %s13 = scalar_select 0, %s12, %s10
  $region1: #{transformer_encoder.1} parent=0
    #allocation2 [shape = 'u8[8192]{0}', space=vmem, size = 0x2000, scoped, tag = 'output window, operand 0, single buffered']
    #allocation3 [shape = 's32[2]{0}', space=sflag, size = 0x8, scoped, tag = 'scoped memory for transformer_encoder.1']
    %14 = vsyncpa [#allocation3], 0
    loop: start=0, step=1, limit=4
    $region2: #{transformer_encoder.1} parent=1 // loop_pre_header
      _
    $region3: #{transformer_encoder.1} parent=1 // loop_header
      %s16 = sphi 0, %s20
      %p17 = scmp.ge.s32.totalorder %s16, 4
      %s23 = sphi 0, %s35
      %s24 = sphi 0, %s31
      %s25 = sphi 0, %s23
      %s26 = sphi 0, %s24
      %s27 = sphi 0, %s25
      %s28 = sphi 0, %s26
      %s38 = sphi 0, %s40
      %s41 = sphi 0, %s38
      %s42 = sphi 0, %s41
      %s58 = sphi 0, %s42
      %s64 = sphi 0, %s66
      %s67 = sphi 0, %s64
      %s68 = sphi 0, %s67
      %s84 = sphi 0, %s68
      %s90 = sphi 0, %s92
      %s93 = sphi 0, %s90
      %s94 = sphi 0, %s93
      %s110 = sphi 0, %s94
      %s116 = sphi 0, %s118
      %s119 = sphi 0, %s116
      %s120 = sphi 0, %s119
      %s136 = sphi 0, %s120
      %s142 = sphi 0, %s144
      %s145 = sphi 0, %s142
      %s146 = sphi 0, %s145
      %s162 = sphi 0, %s146
      %s168 = sphi 0, %s170
      %s171 = sphi 0, %s168
      %s172 = sphi 0, %s171
      %s188 = sphi 0, %s172
      %s194 = sphi 0, %s196
      %s197 = sphi 0, %s194
      %s198 = sphi 0, %s197
      %s214 = sphi 0, %s198
      %s220 = sphi 0, %s222
      %s223 = sphi 0, %s220
      %s224 = sphi 0, %s223
      %s240 = sphi 0, %s224
      %s246 = sphi 0, %s248
      %s249 = sphi 0, %s246
      %s250 = sphi 0, %s249
      %s266 = sphi 0, %s250
      %s272 = sphi 0, %s274
      %s275 = sphi 0, %s272
      %s276 = sphi 0, %s275
      %s292 = sphi 0, %s276
    $region4: #{transformer_encoder.1} parent=1 // loop_header_branch
      %19 = sbr.rel (%p17) target = $region8
    $region5: #{transformer_encoder.1} parent=1 // loop_body
      %s21 = ssub.s32 %s16, 1
      %s22 = ssub.s32 %s16, 2
      %s29 = sadd.s32 1, %s24
      %p30 = scmp.ge.s32.totalorder %s29, 2
      %s31 = scalar_select %p30, 0, %s29
      %s32 = sadd.s32 1, %s23
      %s33 = scalar_select %p30, %s32, %s23
      %p34 = scmp.ge.s32.totalorder %s33, 1
      %s35 = scalar_select %p34, 0, %s33
      %s36 = ssub.s32 %s23, %s35
      %p37 = scmp.eq.s32.totalorder %s36, 0
      %s39 = sadd.s32 %s38, 1
      %s40 = scalar_select %p37, %s38, %s39
      %p43 = pneg %p37
      %p44 = scmp.eq.s32.totalorder %s16, 1
      %p45 = por %p43, %p44
      %p46 = scmp.ne.s32.totalorder %s38, %s41
      %p47 = scmp.eq.s32.totalorder %s16, 0
      %p48 = por %p46, %p47
      %p49 = scmp.ne.s32.totalorder %s38, %s41
      %p50 = scmp.eq.s32.totalorder %s21, 1
      %p51 = por %p49, %p50
      %p52 = scmp.ne.s32.totalorder %s41, %s42
      %p53 = scmp.eq.s32.totalorder %s21, 0
      %p54 = por %p52, %p53
      %p55 = scmp.ne.s32.totalorder %s41, %s42
      %p56 = scmp.eq.s32.totalorder %s22, 1
      %p57 = por %p55, %p56
      %p59 = scmp.ne.s32.totalorder %s42, %s58
      %p60 = scmp.eq.s32.totalorder %s22, 0
      %p61 = por %p59, %p60
      %s62 = ssub.s32 %s24, %s31
      %p63 = scmp.eq.s32.totalorder %s62, 0
      %s65 = sadd.s32 %s64, 1
      %s66 = scalar_select %p63, %s64, %s65
      %p69 = pneg %p63
      %p70 = scmp.eq.s32.totalorder %s16, 1
      %p71 = por %p69, %p70
      %p72 = scmp.ne.s32.totalorder %s64, %s67
      %p73 = scmp.eq.s32.totalorder %s16, 0
      %p74 = por %p72, %p73
      %p75 = scmp.ne.s32.totalorder %s64, %s67
      %p76 = scmp.eq.s32.totalorder %s21, 1
      %p77 = por %p75, %p76
      %p78 = scmp.ne.s32.totalorder %s67, %s68
      %p79 = scmp.eq.s32.totalorder %s21, 0
      %p80 = por %p78, %p79
      %p81 = scmp.ne.s32.totalorder %s67, %s68
      %p82 = scmp.eq.s32.totalorder %s22, 1
      %p83 = por %p81, %p82
      %p85 = scmp.ne.s32.totalorder %s68, %s84
      %p86 = scmp.eq.s32.totalorder %s22, 0
      %p87 = por %p85, %p86
      %s88 = ssub.s32 %s24, %s31
      %p89 = scmp.eq.s32.totalorder %s88, 0
      %s91 = sadd.s32 %s90, 1
      %s92 = scalar_select %p89, %s90, %s91
      %p95 = pneg %p89
      %p96 = scmp.eq.s32.totalorder %s16, 1
      %p97 = por %p95, %p96
      %p98 = scmp.ne.s32.totalorder %s90, %s93
      %p99 = scmp.eq.s32.totalorder %s16, 0
      %p100 = por %p98, %p99
      %p101 = scmp.ne.s32.totalorder %s90, %s93
      %p102 = scmp.eq.s32.totalorder %s21, 1
      %p103 = por %p101, %p102
      %p104 = scmp.ne.s32.totalorder %s93, %s94
      %p105 = scmp.eq.s32.totalorder %s21, 0
      %p106 = por %p104, %p105
      %p107 = scmp.ne.s32.totalorder %s93, %s94
      %p108 = scmp.eq.s32.totalorder %s22, 1
      %p109 = por %p107, %p108
      %p111 = scmp.ne.s32.totalorder %s94, %s110
      %p112 = scmp.eq.s32.totalorder %s22, 0
      %p113 = por %p111, %p112
      %s114 = ssub.s32 %s24, %s31
      %p115 = scmp.eq.s32.totalorder %s114, 0
      %s117 = sadd.s32 %s116, 1
      %s118 = scalar_select %p115, %s116, %s117
      %p121 = pneg %p115
      %p122 = scmp.eq.s32.totalorder %s16, 1
      %p123 = por %p121, %p122
      %p124 = scmp.ne.s32.totalorder %s116, %s119
      %p125 = scmp.eq.s32.totalorder %s16, 0
      %p126 = por %p124, %p125
      %p127 = scmp.ne.s32.totalorder %s116, %s119
      %p128 = scmp.eq.s32.totalorder %s21, 1
      %p129 = por %p127, %p128
      %p130 = scmp.ne.s32.totalorder %s119, %s120
      %p131 = scmp.eq.s32.totalorder %s21, 0
      %p132 = por %p130, %p131
      %p133 = scmp.ne.s32.totalorder %s119, %s120
      %p134 = scmp.eq.s32.totalorder %s22, 1
      %p135 = por %p133, %p134
      %p137 = scmp.ne.s32.totalorder %s120, %s136
      %p138 = scmp.eq.s32.totalorder %s22, 0
      %p139 = por %p137, %p138
      %s140 = ssub.s32 %s24, %s31
      %p141 = scmp.eq.s32.totalorder %s140, 0
      %s143 = sadd.s32 %s142, 1
      %s144 = scalar_select %p141, %s142, %s143
      %p147 = pneg %p141
      %p148 = scmp.eq.s32.totalorder %s16, 1
      %p149 = por %p147, %p148
      %p150 = scmp.ne.s32.totalorder %s142, %s145
      %p151 = scmp.eq.s32.totalorder %s16, 0
      %p152 = por %p150, %p151
      %p153 = scmp.ne.s32.totalorder %s142, %s145
      %p154 = scmp.eq.s32.totalorder %s21, 1
      %p155 = por %p153, %p154
      %p156 = scmp.ne.s32.totalorder %s145, %s146
      %p157 = scmp.eq.s32.totalorder %s21, 0
      %p158 = por %p156, %p157
      %p159 = scmp.ne.s32.totalorder %s145, %s146
      %p160 = scmp.eq.s32.totalorder %s22, 1
      %p161 = por %p159, %p160
      %p163 = scmp.ne.s32.totalorder %s146, %s162
      %p164 = scmp.eq.s32.totalorder %s22, 0
      %p165 = por %p163, %p164
      %s166 = ssub.s32 %s24, %s31
      %p167 = scmp.eq.s32.totalorder %s166, 0
      %s169 = sadd.s32 %s168, 1
      %s170 = scalar_select %p167, %s168, %s169
      %p173 = pneg %p167
      %p174 = scmp.eq.s32.totalorder %s16, 1
      %p175 = por %p173, %p174
      %p176 = scmp.ne.s32.totalorder %s168, %s171
      %p177 = scmp.eq.s32.totalorder %s16, 0
      %p178 = por %p176, %p177
      %p179 = scmp.ne.s32.totalorder %s168, %s171
      %p180 = scmp.eq.s32.totalorder %s21, 1
      %p181 = por %p179, %p180
      %p182 = scmp.ne.s32.totalorder %s171, %s172
      %p183 = scmp.eq.s32.totalorder %s21, 0
      %p184 = por %p182, %p183
      %p185 = scmp.ne.s32.totalorder %s171, %s172
      %p186 = scmp.eq.s32.totalorder %s22, 1
      %p187 = por %p185, %p186
      %p189 = scmp.ne.s32.totalorder %s172, %s188
      %p190 = scmp.eq.s32.totalorder %s22, 0
      %p191 = por %p189, %p190
      %s192 = ssub.s32 %s24, %s31
      %p193 = scmp.eq.s32.totalorder %s192, 0
      %s195 = sadd.s32 %s194, 1
      %s196 = scalar_select %p193, %s194, %s195
      %p199 = pneg %p193
      %p200 = scmp.eq.s32.totalorder %s16, 1
      %p201 = por %p199, %p200
      %p202 = scmp.ne.s32.totalorder %s194, %s197
      %p203 = scmp.eq.s32.totalorder %s16, 0
      %p204 = por %p202, %p203
      %p205 = scmp.ne.s32.totalorder %s194, %s197
      %p206 = scmp.eq.s32.totalorder %s21, 1
      %p207 = por %p205, %p206
      %p208 = scmp.ne.s32.totalorder %s197, %s198
      %p209 = scmp.eq.s32.totalorder %s21, 0
      %p210 = por %p208, %p209
      %p211 = scmp.ne.s32.totalorder %s197, %s198
      %p212 = scmp.eq.s32.totalorder %s22, 1
      %p213 = por %p211, %p212
      %p215 = scmp.ne.s32.totalorder %s198, %s214
      %p216 = scmp.eq.s32.totalorder %s22, 0
      %p217 = por %p215, %p216
      %s218 = ssub.s32 %s24, %s31
      %p219 = scmp.eq.s32.totalorder %s218, 0
      %s221 = sadd.s32 %s220, 1
      %s222 = scalar_select %p219, %s220, %s221
      %p225 = pneg %p219
      %p226 = scmp.eq.s32.totalorder %s16, 1
      %p227 = por %p225, %p226
      %p228 = scmp.ne.s32.totalorder %s220, %s223
      %p229 = scmp.eq.s32.totalorder %s16, 0
      %p230 = por %p228, %p229
      %p231 = scmp.ne.s32.totalorder %s220, %s223
      %p232 = scmp.eq.s32.totalorder %s21, 1
      %p233 = por %p231, %p232
      %p234 = scmp.ne.s32.totalorder %s223, %s224
      %p235 = scmp.eq.s32.totalorder %s21, 0
      %p236 = por %p234, %p235
      %p237 = scmp.ne.s32.totalorder %s223, %s224
      %p238 = scmp.eq.s32.totalorder %s22, 1
      %p239 = por %p237, %p238
      %p241 = scmp.ne.s32.totalorder %s224, %s240
      %p242 = scmp.eq.s32.totalorder %s22, 0
      %p243 = por %p241, %p242
      %s244 = ssub.s32 %s24, %s31
      %p245 = scmp.eq.s32.totalorder %s244, 0
      %s247 = sadd.s32 %s246, 1
      %s248 = scalar_select %p245, %s246, %s247
      %p251 = pneg %p245
      %p252 = scmp.eq.s32.totalorder %s16, 1
      %p253 = por %p251, %p252
      %p254 = scmp.ne.s32.totalorder %s246, %s249
      %p255 = scmp.eq.s32.totalorder %s16, 0
      %p256 = por %p254, %p255
      %p257 = scmp.ne.s32.totalorder %s246, %s249
      %p258 = scmp.eq.s32.totalorder %s21, 1
      %p259 = por %p257, %p258
      %p260 = scmp.ne.s32.totalorder %s249, %s250
      %p261 = scmp.eq.s32.totalorder %s21, 0
      %p262 = por %p260, %p261
      %p263 = scmp.ne.s32.totalorder %s249, %s250
      %p264 = scmp.eq.s32.totalorder %s22, 1
      %p265 = por %p263, %p264
      %p267 = scmp.ne.s32.totalorder %s250, %s266
      %p268 = scmp.eq.s32.totalorder %s22, 0
      %p269 = por %p267, %p268
      %s270 = ssub.s32 %s23, %s35
      %p271 = scmp.eq.s32.totalorder %s270, 0
      %s273 = sadd.s32 %s272, 1
      %s274 = scalar_select %p271, %s272, %s273
      %p277 = pneg %p271
      %p278 = scmp.eq.s32.totalorder %s16, 1
      %p279 = por %p277, %p278
      %p280 = scmp.ne.s32.totalorder %s272, %s275
      %p281 = scmp.eq.s32.totalorder %s16, 0
      %p282 = por %p280, %p281
      %p283 = scmp.ne.s32.totalorder %s272, %s275
      %p284 = scmp.eq.s32.totalorder %s21, 1
      %p285 = por %p283, %p284
      %p286 = scmp.ne.s32.totalorder %s275, %s276
      %p287 = scmp.eq.s32.totalorder %s21, 0
      %p288 = por %p286, %p287
      %p289 = scmp.ne.s32.totalorder %s275, %s276
      %p290 = scmp.eq.s32.totalorder %s22, 1
      %p291 = por %p289, %p290
      %p293 = scmp.ne.s32.totalorder %s276, %s292
      %p294 = scmp.eq.s32.totalorder %s22, 0
      %p295 = por %p293, %p294
      %p296 = scmp.le.s32.totalorder 1, %s16
      %p297 = scmp.lt.s32.totalorder %s16, 3
      %p298 = pnand %p296, %p297
      %p299 = pneg %p298
      // Predicated region
      $region9: #{transformer_encoder.1} parent=5 // pred_check
        _
      $region10: #{transformer_encoder.1} parent=5 // pred_check_branch
        %301 = sbr.rel (%p298) target = $region12
      $region11: #{transformer_encoder.1} parent=5 // pred_region
        %s302 = ssub.s32 %s16, 1
        // Predicated region
        $region13: #{transformer_encoder.1} parent=11 // pred_check
          %p303 = pneg %p54
        $region14: #{transformer_encoder.1} parent=11 // pred_check_branch
          %305 = sbr.rel (%p303) target = $region16
        $region15: #{transformer_encoder.1} parent=11 // pred_region
          %s306 = smul.u32 2, %s25
          %p307 = scmp.lt.s32.totalorder %s306, 1
          %s308 = scalar_select %p307, %s306, 1
          %s309 = smul.addr %s308, 8
          %s310 = scalar_lea.vmem %s0, %s309
          %s311 = smul.u32 2, %s25
        $region16: #{transformer_encoder.1} parent=11 // pred_fallthru
          _
      $region12: #{transformer_encoder.1} parent=5 // pred_fallthru
        _
      %p312 = scmp.lt.s32.totalorder %s16, 2
      // Predicated region
      $region17: #{transformer_encoder.1} parent=5 // pred_check
        %p313 = pneg %p312
      $region18: #{transformer_encoder.1} parent=5 // pred_check_branch
        %315 = sbr.rel (%p313) target = $region20
      $region19: #{transformer_encoder.1} parent=5 // pred_region
        // Predicated region
        $region21: #{transformer_encoder.1} parent=19 // pred_check
          %p316 = pneg %p74
        $region22: #{transformer_encoder.1} parent=19 // pred_check_branch
          %318 = sbr.rel (%p316) target = $region24
        $region23: #{transformer_encoder.1} parent=19 // pred_region
          %p319 = scmp.lt.s32.totalorder %s24, 1
          %s320 = scalar_select %p319, %s24, 1
          %s321 = smul.addr %s320, 2
          %s322 = scalar_lea.vmem %s1, %s321
        $region24: #{transformer_encoder.1} parent=19 // pred_fallthru
          _
        // Predicated region
        $region25: #{transformer_encoder.1} parent=19 // pred_check
          %p323 = pneg %p100
        $region26: #{transformer_encoder.1} parent=19 // pred_check_branch
          %325 = sbr.rel (%p323) target = $region28
        $region27: #{transformer_encoder.1} parent=19 // pred_region
          %p326 = scmp.lt.s32.totalorder %s24, 1
          %s327 = scalar_select %p326, %s24, 1
          %s328 = smul.addr %s327, 4
          %s329 = smul.addr %s328, 4
          %s330 = scalar_lea.vmem %s2, %s329
        $region28: #{transformer_encoder.1} parent=19 // pred_fallthru
          _
        // Predicated region
        $region29: #{transformer_encoder.1} parent=19 // pred_check
          %p331 = pneg %p126
        $region30: #{transformer_encoder.1} parent=19 // pred_check_branch
          %333 = sbr.rel (%p331) target = $region32
        $region31: #{transformer_encoder.1} parent=19 // pred_region
          %p334 = scmp.lt.s32.totalorder %s24, 1
          %s335 = scalar_select %p334, %s24, 1
          %s336 = scalar_lea.vmem %s3, %s335
        $region32: #{transformer_encoder.1} parent=19 // pred_fallthru
          _
        // Predicated region
        $region33: #{transformer_encoder.1} parent=19 // pred_check
          %p337 = pneg %p152
        $region34: #{transformer_encoder.1} parent=19 // pred_check_branch
          %339 = sbr.rel (%p337) target = $region36
        $region35: #{transformer_encoder.1} parent=19 // pred_region
          %p340 = scmp.lt.s32.totalorder %s24, 1
          %s341 = scalar_select %p340, %s24, 1
          %s342 = smul.addr %s341, 2
          %s343 = scalar_lea.vmem %s4, %s342
        $region36: #{transformer_encoder.1} parent=19 // pred_fallthru
          _
        // Predicated region
        $region37: #{transformer_encoder.1} parent=19 // pred_check
          %p344 = pneg %p178
        $region38: #{transformer_encoder.1} parent=19 // pred_check_branch
          %346 = sbr.rel (%p344) target = $region40
        $region39: #{transformer_encoder.1} parent=19 // pred_region
          %p347 = scmp.lt.s32.totalorder %s24, 1
          %s348 = scalar_select %p347, %s24, 1
          %s349 = smul.addr %s348, 4
          %s350 = smul.addr %s349, 4
          %s351 = scalar_lea.vmem %s5, %s350
        $region40: #{transformer_encoder.1} parent=19 // pred_fallthru
          _
        // Predicated region
        $region41: #{transformer_encoder.1} parent=19 // pred_check
          %p352 = pneg %p204
        $region42: #{transformer_encoder.1} parent=19 // pred_check_branch
          %354 = sbr.rel (%p352) target = $region44
        $region43: #{transformer_encoder.1} parent=19 // pred_region
          %p355 = scmp.lt.s32.totalorder %s24, 1
          %s356 = scalar_select %p355, %s24, 1
          %s357 = scalar_lea.vmem %s6, %s356
        $region44: #{transformer_encoder.1} parent=19 // pred_fallthru
          _
        // Predicated region
        $region45: #{transformer_encoder.1} parent=19 // pred_check
          %p358 = pneg %p230
        $region46: #{transformer_encoder.1} parent=19 // pred_check_branch
          %360 = sbr.rel (%p358) target = $region48
        $region47: #{transformer_encoder.1} parent=19 // pred_region
          %p361 = scmp.lt.s32.totalorder %s24, 1
          %s362 = scalar_select %p361, %s24, 1
          %s363 = smul.addr %s362, 8
          %s364 = smul.addr %s363, 4
          %s365 = scalar_lea.vmem %s7, %s364
        $region48: #{transformer_encoder.1} parent=19 // pred_fallthru
          _
        // Predicated region
        $region49: #{transformer_encoder.1} parent=19 // pred_check
          %p366 = pneg %p256
        $region50: #{transformer_encoder.1} parent=19 // pred_check_branch
          %368 = sbr.rel (%p366) target = $region52
        $region51: #{transformer_encoder.1} parent=19 // pred_region
          %p369 = scmp.lt.s32.totalorder %s24, 1
          %s370 = scalar_select %p369, %s24, 1
          %s371 = scalar_lea.vmem %s8, %s370
        $region52: #{transformer_encoder.1} parent=19 // pred_fallthru
          _
      $region20: #{transformer_encoder.1} parent=5 // pred_fallthru
        _
      %p372 = scmp.le.s32.totalorder 1, %s16
      %p373 = scmp.lt.s32.totalorder %s16, 3
      %p374 = pnand %p372, %p373
      %p375 = pneg %p374
      // Predicated region
      $region53: #{transformer_encoder.1} parent=5 // pred_check
        _
      $region54: #{transformer_encoder.1} parent=5 // pred_check_branch
        %377 = sbr.rel (%p374) target = $region56
      $region55: #{transformer_encoder.1} parent=5 // pred_region
        %s378 = ssub.s32 %s16, 1
        %s379 = smul.u32 2, %s25
        %p380 = scmp.lt.s32.totalorder %s379, 1
        %s381 = scalar_select %p380, %s379, 1
        %s382 = smul.addr %s381, 8
        %s383 = scalar_lea.vmem %s0, %s382
        %p384 = pneg %p54
        %p385 = pneg %p51
        %p386 = scmp.lt.s32.totalorder %s26, 1
        %s387 = scalar_select %p386, %s26, 1
        %s388 = smul.addr %s387, 2
        %s389 = scalar_lea.vmem %s1, %s388
        %p390 = pneg %p80
        %p391 = pneg %p77
        %p392 = scmp.lt.s32.totalorder %s26, 1
        %s393 = scalar_select %p392, %s26, 1
        %s394 = smul.addr %s393, 4
        %s395 = smul.addr %s394, 4
        %s396 = scalar_lea.vmem %s2, %s395
        %p397 = pneg %p106
        %p398 = pneg %p103
        %p399 = scmp.lt.s32.totalorder %s26, 1
        %s400 = scalar_select %p399, %s26, 1
        %s401 = scalar_lea.vmem %s3, %s400
        %p402 = pneg %p132
        %p403 = pneg %p129
        %p404 = scmp.lt.s32.totalorder %s26, 1
        %s405 = scalar_select %p404, %s26, 1
        %s406 = smul.addr %s405, 2
        %s407 = scalar_lea.vmem %s4, %s406
        %p408 = pneg %p158
        %p409 = pneg %p155
        %p410 = scmp.lt.s32.totalorder %s26, 1
        %s411 = scalar_select %p410, %s26, 1
        %s412 = smul.addr %s411, 4
        %s413 = smul.addr %s412, 4
        %s414 = scalar_lea.vmem %s5, %s413
        %p415 = pneg %p184
        %p416 = pneg %p181
        %p417 = scmp.lt.s32.totalorder %s26, 1
        %s418 = scalar_select %p417, %s26, 1
        %s419 = scalar_lea.vmem %s6, %s418
        %p420 = pneg %p210
        %p421 = pneg %p207
        %p422 = scmp.lt.s32.totalorder %s26, 1
        %s423 = scalar_select %p422, %s26, 1
        %s424 = smul.addr %s423, 8
        %s425 = smul.addr %s424, 4
        %s426 = scalar_lea.vmem %s7, %s425
        %p427 = pneg %p236
        %p428 = pneg %p233
        %p429 = scmp.lt.s32.totalorder %s26, 1
        %s430 = scalar_select %p429, %s26, 1
        %s431 = scalar_lea.vmem %s8, %s430
        %p432 = pneg %p262
        %p433 = pneg %p259
        %p434 = pneg %p288
        %p435 = pneg %p285
        %s436 = smul.u32 2, %s25
        %p437 = scmp.lt.s32.totalorder %s436, 1
        %s438 = scalar_select %p437, %s436, 1
        %s439 = smul.addr %s438, 8
        %s440 = scalar_lea.vmem %s0, %s439
        %s441 = smul.u32 2, %s25
        %p442 = scmp.lt.s32.totalorder %s26, 1
        %s443 = scalar_select %p442, %s26, 1
        %s444 = smul.addr %s443, 2
        %s445 = scalar_lea.vmem %s1, %s444
        %p446 = scmp.lt.s32.totalorder %s26, 1
        %s447 = scalar_select %p446, %s26, 1
        %s448 = smul.addr %s447, 4
        %s449 = smul.addr %s448, 4
        %s450 = scalar_lea.vmem %s2, %s449
        %p451 = scmp.lt.s32.totalorder %s26, 1
        %s452 = scalar_select %p451, %s26, 1
        %s453 = scalar_lea.vmem %s3, %s452
        %p454 = scmp.lt.s32.totalorder %s26, 1
        %s455 = scalar_select %p454, %s26, 1
        %s456 = smul.addr %s455, 2
        %s457 = scalar_lea.vmem %s4, %s456
        %p458 = scmp.lt.s32.totalorder %s26, 1
        %s459 = scalar_select %p458, %s26, 1
        %s460 = smul.addr %s459, 4
        %s461 = smul.addr %s460, 4
        %s462 = scalar_lea.vmem %s5, %s461
        %p463 = scmp.lt.s32.totalorder %s26, 1
        %s464 = scalar_select %p463, %s26, 1
        %s465 = scalar_lea.vmem %s6, %s464
        %p466 = scmp.lt.s32.totalorder %s26, 1
        %s467 = scalar_select %p466, %s26, 1
        %s468 = smul.addr %s467, 8
        %s469 = smul.addr %s468, 4
        %s470 = scalar_lea.vmem %s7, %s469
        %p471 = scmp.lt.s32.totalorder %s26, 1
        %s472 = scalar_select %p471, %s26, 1
        %s473 = scalar_lea.vmem %s8, %s472
        %s474 = smul.u32 2, %s25
        %p476 = scmp.eq.s32.totalorder %s26, 0
        // Predicated region
        $region57: #{transformer_encoder.1} parent=55 // pred_check
          %p477 = pneg %p476
        $region58: #{transformer_encoder.1} parent=55 // pred_check_branch
          %479 = sbr.rel (%p477) target = $region60
        $region59: #{transformer_encoder.1} parent=55 // pred_region
          %v480 = vld [vmem:[%s440] sm:$0xff]
          %v481 = vld [vmem:[%s440 + $0x8] sm:$0xff]
          %vm482 = vcmask 261120
          %483 = vst.msk [vmem:[#allocation2] sm:$0xff] %vm482, %v480
          %484 = vst.msk [vmem:[#allocation2 + $0x8] sm:$0xff] %vm482, %v481
        $region60: #{transformer_encoder.1} parent=55 // pred_fallthru
          _
        %v485 = vld [vmem:[#allocation2] sm:$0xff]
        %v486 = vld [vmem:[#allocation2 + $0x8] sm:$0xff]
        %v487 = vld [vmem:[%s445] sm:$0x1]
        %v488 = vld [vmem:[%s445 + $0x1] sm:$0x1]
        %vm489 = vcmask 261120
        %v490 = vsel %vm489, %v485, 0.0
        %491 = vadd.xlane.f32.xlu0 %v490
        %v492 = vpop.xlane.xlu0 %491
        %v493 = vsel %vm489, %v486, 0.0
        %494 = vadd.xlane.f32.xlu0 %v493
        %v495 = vpop.xlane.xlu0 %494
        %v496 = vrcp.pop 32.0
        %v497 = vmul.f32 %v492, %v496
        %v498 = vmul.f32 %v495, %v496
        %v499 = vsub.f32 %v485, %v497
        %v500 = vsub.f32 %v486, %v498
        %v501 = vmul.f32 %v499, %v499
        %v502 = vmul.f32 %v500, %v500
        %v503 = vsel %vm489, %v501, 0.0
        %504 = vadd.xlane.f32.xlu0 %v503
        %v505 = vpop.xlane.xlu0 %504
        %v506 = vsel %vm489, %v502, 0.0
        %507 = vadd.xlane.f32.xlu0 %v506
        %v508 = vpop.xlane.xlu0 %507
        %v509 = vmul.f32 %v505, %v496
        %v510 = vmul.f32 %v508, %v496
        %v511 = vadd.f32 %v509, 1e-05
        %v512 = vadd.f32 %v510, 1e-05
        %v513 = vrsqrt.pop %v511
        %v514 = vrsqrt.pop %v512
        %v515 = vmul.f32 %v499, %v513
        %v516 = vmul.f32 %v500, %v514
        %v517 = vlaneseq
        %v518 = vshrl.u32 %v517, 7
        %v519 = vsub.s32 0, %v518
        %v520 = vrot.slane %v487, %v519
        %v521 = vmul.f32 %v515, %v520
        %v522 = vmul.f32 %v516, %v520
        %v523 = vlaneseq
        %v524 = vshrl.u32 %v523, 7
        %v525 = vsub.s32 0, %v524
        %v526 = vrot.slane %v488, %v525
        %v527 = vadd.f32 %v521, %v526
        %v528 = vadd.f32 %v522, %v526
        %v529 = vpack.c.bf16 %v528, %v527
        %v530 = vld [vmem:[%s450] sm:$0xf]
        %v531 = vld [vmem:[%s450 + $0x4] sm:$0xf]
        %v532 = vld [vmem:[%s450 + $0x8] sm:$0xf]
        %v533 = vld [vmem:[%s450 + $0xc] sm:$0xf]
        %v534 = vld [vmem:[%s453] sm:$0x1]
        %v536 = vlaneseq
        %v537 = vshrl.u32 %v536, 7
        %v538 = vsub.s32 0, %v537
        %v539 = vrot.slane %v534, %v538
        %v545 = vunpack.c.l.b16 %v530
        %v546 = vunpack.c.l.b16 %v531
        %v547 = vunpack.c.l.b16 %v532
        %v548 = vunpack.c.l.b16 %v533
        %v549 = vpack.c.b16 %v546, %v545
        %v550 = vpack.c.b16 %v548, %v547
        %v554 = vsel %vm489, %v529, 0
        %556 = vmatprep.subr.bf16.mxu0 0
        %557 = vmatpush1.bf16.msra.mxu0 0
        %558 = vmatprep.subr.bf16.mxu0 0
        %559 = vmatpush1.bf16.msra.mxu0 0
        %560 = vmatprep.subr.bf16.mxu0 0
        %561 = vmatpush1.bf16.msra.mxu0 0
        %562 = vmatprep.subr.bf16.mxu0 0
        %563 = vmatpush1.bf16.msra.mxu0 0
        %564 = vmatprep.subr.bf16.mxu0 0
        %565 = vmatpush1.bf16.msra.mxu0 0
        %566 = vmatprep.subr.bf16.mxu0 0
        %567 = vmatpush1.bf16.msra.mxu0 0
        %568 = vmatprep.subr.bf16.mxu0 0
        %569 = vmatpush1.bf16.msra.mxu0 %v550
        %570 = vmatprep.subr.bf16.mxu0 0
        %571 = vmatpush1.bf16.msra.mxu0 %v549
        %572 = vmatprep.subr.bf16.mxu0 0
        %573 = vmatpush2.bf16.msra.mxu0 0
        %574 = vmatprep.subr.bf16.mxu0 0
        %575 = vmatpush2.bf16.msra.mxu0 0
        %576 = vmatprep.subr.bf16.mxu0 0
        %577 = vmatpush2.bf16.msra.mxu0 0
        %578 = vmatprep.subr.bf16.mxu0 0
        %579 = vmatpush2.bf16.msra.mxu0 0
        %580 = vmatprep.subr.bf16.mxu0 0
        %581 = vmatpush2.bf16.msra.mxu0 0
        %582 = vmatprep.subr.bf16.mxu0 0
        %583 = vmatpush2.bf16.msra.mxu0 0
        %584 = vmatprep.subr.bf16.mxu0 0
        %585 = vmatpush2.bf16.msra.mxu0 0
        %586 = vmatprep.subr.bf16.mxu0 0
        %587 = vmatpush2.bf16.msra.mxu0 0
        %588 = vmatprep.mubr.bf16.mxu0 0
        %589 = vmatmul.mubr.bf16.gmra.mxu0 %v554
        %v590 = vpop.f32.mrf.mxu0
        %v591 = vadd.f32 %v539, %v590
        %v592 = vpop.f32.mrf.mxu0
        %v593 = vpop.f32.mrf.mxu0
        %v594 = vadd.f32 %v539, %v593
        %v595 = vpop.f32.mrf.mxu0
        %596 = vdwg.mxu0
        %v597 = vpack.c.bf16 %v594, %v591
        %599 = vrot.lane.b32.xlu0 %v597, 120
        %v600 = vpop.permute.xlu0 %599
        %601 = vrot.lane.b32.xlu0 %v597, 112
        %v602 = vpop.permute.xlu0 %601
        %603 = vrot.lane.b32.xlu0 %v597, 104
        %v604 = vpop.permute.xlu0 %603
        %v605 = vrot.slane %v597, 4
        %606 = vrot.lane.b32.xlu0 %v605, 120
        %v607 = vpop.permute.xlu0 %606
        %608 = vrot.lane.b32.xlu0 %v605, 112
        %v609 = vpop.permute.xlu0 %608
        %610 = vrot.lane.b32.xlu0 %v605, 104
        %v611 = vpop.permute.xlu0 %610
        %612 = vrot.lane.b32.xlu0 %v597, 96
        %v613 = vpop.permute.xlu0 %612
        %vm614 = vcmask 64512
        %v616 = vsel %vm614, %v597, 0
        %v619 = vsel %vm614, %v613, 0
        %621 = vmatprep.subr.bf16.mxu0 0
        %622 = vmatpush1.bf16.xpose.msra.mxu0 0
        %623 = vmatprep.subr.bf16.mxu0 0
        %624 = vmatpush1.bf16.xpose.msra.mxu0 0
        %625 = vmatprep.subr.bf16.mxu0 0
        %626 = vmatpush1.bf16.xpose.msra.mxu0 0
        %627 = vmatprep.subr.bf16.mxu0 0
        %628 = vmatpush1.bf16.xpose.msra.mxu0 0
        %629 = vmatprep.subr.bf16.mxu0 0
        %630 = vmatpush1.bf16.xpose.msra.mxu0 0
        %631 = vmatprep.subr.bf16.mxu0 0
        %632 = vmatpush1.bf16.xpose.msra.mxu0 0
        %633 = vmatprep.subr.bf16.mxu0 0
        %634 = vmatpush1.bf16.xpose.msra.mxu0 0
        %635 = vmatprep.subr.bf16.mxu0 0
        %636 = vmatpush1.bf16.xpose.msra.mxu0 %v619
        %637 = vmatprep.subr.bf16.mxu0 0
        %638 = vmatpush2.bf16.xpose.msra.mxu0 0
        %639 = vmatprep.subr.bf16.mxu0 0
        %640 = vmatpush2.bf16.xpose.msra.mxu0 0
        %641 = vmatprep.subr.bf16.mxu0 0
        %642 = vmatpush2.bf16.xpose.msra.mxu0 0
        %643 = vmatprep.subr.bf16.mxu0 0
        %644 = vmatpush2.bf16.xpose.msra.mxu0 0
        %645 = vmatprep.subr.bf16.mxu0 0
        %646 = vmatpush2.bf16.xpose.msra.mxu0 0
        %647 = vmatprep.subr.bf16.mxu0 0
        %648 = vmatpush2.bf16.xpose.msra.mxu0 0
        %649 = vmatprep.subr.bf16.mxu0 0
        %650 = vmatpush2.bf16.xpose.msra.mxu0 0
        %651 = vmatprep.subr.bf16.mxu0 0
        %652 = vmatpush2.bf16.xpose.msra.mxu0 0
        %653 = vmatprep.mubr.bf16.mxu0 0
        %654 = vmatmul.mubr.bf16.gmra.mxu0 %v616
        %v655 = vpop.f32.mrf.mxu0
        %v656 = vadd.f32 0.0, %v655
        %v657 = vpop.f32.mrf.mxu0
        %v658 = vpop.f32.mrf.mxu0
        %v659 = vpop.f32.mrf.mxu0
        %660 = vdwg.mxu0
        %661 = vrot.lane.b32.xlu0 %v600, 96
        %v662 = vpop.permute.xlu0 %661
        %v664 = vsel %vm614, %v600, 0
        %v667 = vsel %vm614, %v662, 0
        %669 = vmatprep.subr.bf16.mxu0 0
        %670 = vmatpush1.bf16.xpose.msra.mxu0 0
        %671 = vmatprep.subr.bf16.mxu0 0
        %672 = vmatpush1.bf16.xpose.msra.mxu0 0
        %673 = vmatprep.subr.bf16.mxu0 0
        %674 = vmatpush1.bf16.xpose.msra.mxu0 0
        %675 = vmatprep.subr.bf16.mxu0 0
        %676 = vmatpush1.bf16.xpose.msra.mxu0 0
        %677 = vmatprep.subr.bf16.mxu0 0
        %678 = vmatpush1.bf16.xpose.msra.mxu0 0
        %679 = vmatprep.subr.bf16.mxu0 0
        %680 = vmatpush1.bf16.xpose.msra.mxu0 0
        %681 = vmatprep.subr.bf16.mxu0 0
        %682 = vmatpush1.bf16.xpose.msra.mxu0 0
        %683 = vmatprep.subr.bf16.mxu0 0
        %684 = vmatpush1.bf16.xpose.msra.mxu0 %v667
        %685 = vmatprep.subr.bf16.mxu0 0
        %686 = vmatpush2.bf16.xpose.msra.mxu0 0
        %687 = vmatprep.subr.bf16.mxu0 0
        %688 = vmatpush2.bf16.xpose.msra.mxu0 0
        %689 = vmatprep.subr.bf16.mxu0 0
        %690 = vmatpush2.bf16.xpose.msra.mxu0 0
        %691 = vmatprep.subr.bf16.mxu0 0
        %692 = vmatpush2.bf16.xpose.msra.mxu0 0
        %693 = vmatprep.subr.bf16.mxu0 0
        %694 = vmatpush2.bf16.xpose.msra.mxu0 0
        %695 = vmatprep.subr.bf16.mxu0 0
        %696 = vmatpush2.bf16.xpose.msra.mxu0 0
        %697 = vmatprep.subr.bf16.mxu0 0
        %698 = vmatpush2.bf16.xpose.msra.mxu0 0
        %699 = vmatprep.subr.bf16.mxu0 0
        %700 = vmatpush2.bf16.xpose.msra.mxu0 0
        %701 = vmatprep.mubr.bf16.mxu0 0
        %702 = vmatmul.mubr.bf16.gmra.mxu0 %v664
        %v703 = vpop.f32.mrf.mxu0
        %v704 = vadd.f32 0.0, %v703
        %v705 = vpop.f32.mrf.mxu0
        %v706 = vpop.f32.mrf.mxu0
        %v707 = vpop.f32.mrf.mxu0
        %708 = vdwg.mxu0
        %709 = vrot.lane.b32.xlu0 %v602, 96
        %v710 = vpop.permute.xlu0 %709
        %v712 = vsel %vm614, %v602, 0
        %v715 = vsel %vm614, %v710, 0
        %717 = vmatprep.subr.bf16.mxu0 0
        %718 = vmatpush1.bf16.xpose.msra.mxu0 0
        %719 = vmatprep.subr.bf16.mxu0 0
        %720 = vmatpush1.bf16.xpose.msra.mxu0 0
        %721 = vmatprep.subr.bf16.mxu0 0
        %722 = vmatpush1.bf16.xpose.msra.mxu0 0
        %723 = vmatprep.subr.bf16.mxu0 0
        %724 = vmatpush1.bf16.xpose.msra.mxu0 0
        %725 = vmatprep.subr.bf16.mxu0 0
        %726 = vmatpush1.bf16.xpose.msra.mxu0 0
        %727 = vmatprep.subr.bf16.mxu0 0
        %728 = vmatpush1.bf16.xpose.msra.mxu0 0
        %729 = vmatprep.subr.bf16.mxu0 0
        %730 = vmatpush1.bf16.xpose.msra.mxu0 0
        %731 = vmatprep.subr.bf16.mxu0 0
        %732 = vmatpush1.bf16.xpose.msra.mxu0 %v715
        %733 = vmatprep.subr.bf16.mxu0 0
        %734 = vmatpush2.bf16.xpose.msra.mxu0 0
        %735 = vmatprep.subr.bf16.mxu0 0
        %736 = vmatpush2.bf16.xpose.msra.mxu0 0
        %737 = vmatprep.subr.bf16.mxu0 0
        %738 = vmatpush2.bf16.xpose.msra.mxu0 0
        %739 = vmatprep.subr.bf16.mxu0 0
        %740 = vmatpush2.bf16.xpose.msra.mxu0 0
        %741 = vmatprep.subr.bf16.mxu0 0
        %742 = vmatpush2.bf16.xpose.msra.mxu0 0
        %743 = vmatprep.subr.bf16.mxu0 0
        %744 = vmatpush2.bf16.xpose.msra.mxu0 0
        %745 = vmatprep.subr.bf16.mxu0 0
        %746 = vmatpush2.bf16.xpose.msra.mxu0 0
        %747 = vmatprep.subr.bf16.mxu0 0
        %748 = vmatpush2.bf16.xpose.msra.mxu0 0
        %749 = vmatprep.mubr.bf16.mxu0 0
        %750 = vmatmul.mubr.bf16.gmra.mxu0 %v712
        %v751 = vpop.f32.mrf.mxu0
        %v752 = vadd.f32 0.0, %v751
        %v753 = vpop.f32.mrf.mxu0
        %v754 = vpop.f32.mrf.mxu0
        %v755 = vpop.f32.mrf.mxu0
        %756 = vdwg.mxu0
        %757 = vrot.lane.b32.xlu0 %v604, 96
        %v758 = vpop.permute.xlu0 %757
        %v760 = vsel %vm614, %v604, 0
        %v763 = vsel %vm614, %v758, 0
        %765 = vmatprep.subr.bf16.mxu0 0
        %766 = vmatpush1.bf16.xpose.msra.mxu0 0
        %767 = vmatprep.subr.bf16.mxu0 0
        %768 = vmatpush1.bf16.xpose.msra.mxu0 0
        %769 = vmatprep.subr.bf16.mxu0 0
        %770 = vmatpush1.bf16.xpose.msra.mxu0 0
        %771 = vmatprep.subr.bf16.mxu0 0
        %772 = vmatpush1.bf16.xpose.msra.mxu0 0
        %773 = vmatprep.subr.bf16.mxu0 0
        %774 = vmatpush1.bf16.xpose.msra.mxu0 0
        %775 = vmatprep.subr.bf16.mxu0 0
        %776 = vmatpush1.bf16.xpose.msra.mxu0 0
        %777 = vmatprep.subr.bf16.mxu0 0
        %778 = vmatpush1.bf16.xpose.msra.mxu0 0
        %779 = vmatprep.subr.bf16.mxu0 0
        %780 = vmatpush1.bf16.xpose.msra.mxu0 %v763
        %781 = vmatprep.subr.bf16.mxu0 0
        %782 = vmatpush2.bf16.xpose.msra.mxu0 0
        %783 = vmatprep.subr.bf16.mxu0 0
        %784 = vmatpush2.bf16.xpose.msra.mxu0 0
        %785 = vmatprep.subr.bf16.mxu0 0
        %786 = vmatpush2.bf16.xpose.msra.mxu0 0
        %787 = vmatprep.subr.bf16.mxu0 0
        %788 = vmatpush2.bf16.xpose.msra.mxu0 0
        %789 = vmatprep.subr.bf16.mxu0 0
        %790 = vmatpush2.bf16.xpose.msra.mxu0 0
        %791 = vmatprep.subr.bf16.mxu0 0
        %792 = vmatpush2.bf16.xpose.msra.mxu0 0
        %793 = vmatprep.subr.bf16.mxu0 0
        %794 = vmatpush2.bf16.xpose.msra.mxu0 0
        %795 = vmatprep.subr.bf16.mxu0 0
        %796 = vmatpush2.bf16.xpose.msra.mxu0 0
        %797 = vmatprep.mubr.bf16.mxu0 0
        %798 = vmatmul.mubr.bf16.gmra.mxu0 %v760
        %v799 = vpop.f32.mrf.mxu0
        %v800 = vadd.f32 0.0, %v799
        %v801 = vpop.f32.mrf.mxu0
        %v802 = vpop.f32.mrf.mxu0
        %v803 = vpop.f32.mrf.mxu0
        %804 = vdwg.mxu0
        %805 = vrot.lane.b32.xlu0 %v605, 96
        %v806 = vpop.permute.xlu0 %805
        %v808 = vsel %vm614, %v605, 0
        %v811 = vsel %vm614, %v806, 0
        %813 = vmatprep.subr.bf16.mxu0 0
        %814 = vmatpush1.bf16.xpose.msra.mxu0 0
        %815 = vmatprep.subr.bf16.mxu0 0
        %816 = vmatpush1.bf16.xpose.msra.mxu0 0
        %817 = vmatprep.subr.bf16.mxu0 0
        %818 = vmatpush1.bf16.xpose.msra.mxu0 0
        %819 = vmatprep.subr.bf16.mxu0 0
        %820 = vmatpush1.bf16.xpose.msra.mxu0 0
        %821 = vmatprep.subr.bf16.mxu0 0
        %822 = vmatpush1.bf16.xpose.msra.mxu0 0
        %823 = vmatprep.subr.bf16.mxu0 0
        %824 = vmatpush1.bf16.xpose.msra.mxu0 0
        %825 = vmatprep.subr.bf16.mxu0 0
        %826 = vmatpush1.bf16.xpose.msra.mxu0 0
        %827 = vmatprep.subr.bf16.mxu0 0
        %828 = vmatpush1.bf16.xpose.msra.mxu0 %v811
        %829 = vmatprep.subr.bf16.mxu0 0
        %830 = vmatpush2.bf16.xpose.msra.mxu0 0
        %831 = vmatprep.subr.bf16.mxu0 0
        %832 = vmatpush2.bf16.xpose.msra.mxu0 0
        %833 = vmatprep.subr.bf16.mxu0 0
        %834 = vmatpush2.bf16.xpose.msra.mxu0 0
        %835 = vmatprep.subr.bf16.mxu0 0
        %836 = vmatpush2.bf16.xpose.msra.mxu0 0
        %837 = vmatprep.subr.bf16.mxu0 0
        %838 = vmatpush2.bf16.xpose.msra.mxu0 0
        %839 = vmatprep.subr.bf16.mxu0 0
        %840 = vmatpush2.bf16.xpose.msra.mxu0 0
        %841 = vmatprep.subr.bf16.mxu0 0
        %842 = vmatpush2.bf16.xpose.msra.mxu0 0
        %843 = vmatprep.subr.bf16.mxu0 0
        %844 = vmatpush2.bf16.xpose.msra.mxu0 0
        %845 = vmatprep.mubr.bf16.mxu0 0
        %846 = vmatmul.mubr.bf16.gmra.mxu0 %v808
        %v847 = vpop.f32.mrf.mxu0
        %v848 = vadd.f32 0.0, %v847
        %v849 = vpop.f32.mrf.mxu0
        %v850 = vpop.f32.mrf.mxu0
        %v851 = vpop.f32.mrf.mxu0
        %852 = vdwg.mxu0
        %853 = vrot.lane.b32.xlu0 %v607, 96
        %v854 = vpop.permute.xlu0 %853
        %v856 = vsel %vm614, %v607, 0
        %v859 = vsel %vm614, %v854, 0
        %861 = vmatprep.subr.bf16.mxu0 0
        %862 = vmatpush1.bf16.xpose.msra.mxu0 0
        %863 = vmatprep.subr.bf16.mxu0 0
        %864 = vmatpush1.bf16.xpose.msra.mxu0 0
        %865 = vmatprep.subr.bf16.mxu0 0
        %866 = vmatpush1.bf16.xpose.msra.mxu0 0
        %867 = vmatprep.subr.bf16.mxu0 0
        %868 = vmatpush1.bf16.xpose.msra.mxu0 0
        %869 = vmatprep.subr.bf16.mxu0 0
        %870 = vmatpush1.bf16.xpose.msra.mxu0 0
        %871 = vmatprep.subr.bf16.mxu0 0
        %872 = vmatpush1.bf16.xpose.msra.mxu0 0
        %873 = vmatprep.subr.bf16.mxu0 0
        %874 = vmatpush1.bf16.xpose.msra.mxu0 0
        %875 = vmatprep.subr.bf16.mxu0 0
        %876 = vmatpush1.bf16.xpose.msra.mxu0 %v859
        %877 = vmatprep.subr.bf16.mxu0 0
        %878 = vmatpush2.bf16.xpose.msra.mxu0 0
        %879 = vmatprep.subr.bf16.mxu0 0
        %880 = vmatpush2.bf16.xpose.msra.mxu0 0
        %881 = vmatprep.subr.bf16.mxu0 0
        %882 = vmatpush2.bf16.xpose.msra.mxu0 0
        %883 = vmatprep.subr.bf16.mxu0 0
        %884 = vmatpush2.bf16.xpose.msra.mxu0 0
        %885 = vmatprep.subr.bf16.mxu0 0
        %886 = vmatpush2.bf16.xpose.msra.mxu0 0
        %887 = vmatprep.subr.bf16.mxu0 0
        %888 = vmatpush2.bf16.xpose.msra.mxu0 0
        %889 = vmatprep.subr.bf16.mxu0 0
        %890 = vmatpush2.bf16.xpose.msra.mxu0 0
        %891 = vmatprep.subr.bf16.mxu0 0
        %892 = vmatpush2.bf16.xpose.msra.mxu0 0
        %893 = vmatprep.mubr.bf16.mxu0 0
        %894 = vmatmul.mubr.bf16.gmra.mxu0 %v856
        %v895 = vpop.f32.mrf.mxu0
        %v896 = vadd.f32 0.0, %v895
        %v897 = vpop.f32.mrf.mxu0
        %v898 = vpop.f32.mrf.mxu0
        %v899 = vpop.f32.mrf.mxu0
        %900 = vdwg.mxu0
        %901 = vrot.lane.b32.xlu0 %v609, 96
        %v902 = vpop.permute.xlu0 %901
        %v904 = vsel %vm614, %v609, 0
        %v907 = vsel %vm614, %v902, 0
        %909 = vmatprep.subr.bf16.mxu0 0
        %910 = vmatpush1.bf16.xpose.msra.mxu0 0
        %911 = vmatprep.subr.bf16.mxu0 0
        %912 = vmatpush1.bf16.xpose.msra.mxu0 0
        %913 = vmatprep.subr.bf16.mxu0 0
        %914 = vmatpush1.bf16.xpose.msra.mxu0 0
        %915 = vmatprep.subr.bf16.mxu0 0
        %916 = vmatpush1.bf16.xpose.msra.mxu0 0
        %917 = vmatprep.subr.bf16.mxu0 0
        %918 = vmatpush1.bf16.xpose.msra.mxu0 0
        %919 = vmatprep.subr.bf16.mxu0 0
        %920 = vmatpush1.bf16.xpose.msra.mxu0 0
        %921 = vmatprep.subr.bf16.mxu0 0
        %922 = vmatpush1.bf16.xpose.msra.mxu0 0
        %923 = vmatprep.subr.bf16.mxu0 0
        %924 = vmatpush1.bf16.xpose.msra.mxu0 %v907
        %925 = vmatprep.subr.bf16.mxu0 0
        %926 = vmatpush2.bf16.xpose.msra.mxu0 0
        %927 = vmatprep.subr.bf16.mxu0 0
        %928 = vmatpush2.bf16.xpose.msra.mxu0 0
        %929 = vmatprep.subr.bf16.mxu0 0
        %930 = vmatpush2.bf16.xpose.msra.mxu0 0
        %931 = vmatprep.subr.bf16.mxu0 0
        %932 = vmatpush2.bf16.xpose.msra.mxu0 0
        %933 = vmatprep.subr.bf16.mxu0 0
        %934 = vmatpush2.bf16.xpose.msra.mxu0 0
        %935 = vmatprep.subr.bf16.mxu0 0
        %936 = vmatpush2.bf16.xpose.msra.mxu0 0
        %937 = vmatprep.subr.bf16.mxu0 0
        %938 = vmatpush2.bf16.xpose.msra.mxu0 0
        %939 = vmatprep.subr.bf16.mxu0 0
        %940 = vmatpush2.bf16.xpose.msra.mxu0 0
        %941 = vmatprep.mubr.bf16.mxu0 0
        %942 = vmatmul.mubr.bf16.gmra.mxu0 %v904
        %v943 = vpop.f32.mrf.mxu0
        %v944 = vadd.f32 0.0, %v943
        %v945 = vpop.f32.mrf.mxu0
        %v946 = vpop.f32.mrf.mxu0
        %v947 = vpop.f32.mrf.mxu0
        %948 = vdwg.mxu0
        %949 = vrot.lane.b32.xlu0 %v611, 96
        %v950 = vpop.permute.xlu0 %949
        %v952 = vsel %vm614, %v611, 0
        %v955 = vsel %vm614, %v950, 0
        %957 = vmatprep.subr.bf16.mxu0 0
        %958 = vmatpush1.bf16.xpose.msra.mxu0 0
        %959 = vmatprep.subr.bf16.mxu0 0
        %960 = vmatpush1.bf16.xpose.msra.mxu0 0
        %961 = vmatprep.subr.bf16.mxu0 0
        %962 = vmatpush1.bf16.xpose.msra.mxu0 0
        %963 = vmatprep.subr.bf16.mxu0 0
        %964 = vmatpush1.bf16.xpose.msra.mxu0 0
        %965 = vmatprep.subr.bf16.mxu0 0
        %966 = vmatpush1.bf16.xpose.msra.mxu0 0
        %967 = vmatprep.subr.bf16.mxu0 0
        %968 = vmatpush1.bf16.xpose.msra.mxu0 0
        %969 = vmatprep.subr.bf16.mxu0 0
        %970 = vmatpush1.bf16.xpose.msra.mxu0 0
        %971 = vmatprep.subr.bf16.mxu0 0
        %972 = vmatpush1.bf16.xpose.msra.mxu0 %v955
        %973 = vmatprep.subr.bf16.mxu0 0
        %974 = vmatpush2.bf16.xpose.msra.mxu0 0
        %975 = vmatprep.subr.bf16.mxu0 0
        %976 = vmatpush2.bf16.xpose.msra.mxu0 0
        %977 = vmatprep.subr.bf16.mxu0 0
        %978 = vmatpush2.bf16.xpose.msra.mxu0 0
        %979 = vmatprep.subr.bf16.mxu0 0
        %980 = vmatpush2.bf16.xpose.msra.mxu0 0
        %981 = vmatprep.subr.bf16.mxu0 0
        %982 = vmatpush2.bf16.xpose.msra.mxu0 0
        %983 = vmatprep.subr.bf16.mxu0 0
        %984 = vmatpush2.bf16.xpose.msra.mxu0 0
        %985 = vmatprep.subr.bf16.mxu0 0
        %986 = vmatpush2.bf16.xpose.msra.mxu0 0
        %987 = vmatprep.subr.bf16.mxu0 0
        %988 = vmatpush2.bf16.xpose.msra.mxu0 0
        %989 = vmatprep.mubr.bf16.mxu0 0
        %990 = vmatmul.mubr.bf16.gmra.mxu0 %v952
        %v991 = vpop.f32.mrf.mxu0
        %v992 = vadd.f32 0.0, %v991
        %v993 = vpop.f32.mrf.mxu0
        %v994 = vpop.f32.mrf.mxu0
        %v995 = vpop.f32.mrf.mxu0
        %996 = vdwg.mxu0
        %v997 = vmul.f32 %v656, 0.35355338
        %v998 = vmul.f32 %v704, 0.35355338
        %v999 = vmul.f32 %v752, 0.35355338
        %v1000 = vmul.f32 %v800, 0.35355338
        %v1001 = vmul.f32 %v848, 0.35355338
        %v1002 = vmul.f32 %v896, 0.35355338
        %v1003 = vmul.f32 %v944, 0.35355338
        %v1004 = vmul.f32 %v992, 0.35355338
        %v1005 = vsel %vm614, %v997, -inf
        %1006 = vmax.xlane.f32.xlu0 %v1005
        %v1007 = vpop.xlane.xlu0 %1006
        %v1008 = vsel %vm614, %v998, -inf
        %1009 = vmax.xlane.f32.xlu0 %v1008
        %v1010 = vpop.xlane.xlu0 %1009
        %v1011 = vsel %vm614, %v999, -inf
        %1012 = vmax.xlane.f32.xlu0 %v1011
        %v1013 = vpop.xlane.xlu0 %1012
        %v1014 = vsel %vm614, %v1000, -inf
        %1015 = vmax.xlane.f32.xlu0 %v1014
        %v1016 = vpop.xlane.xlu0 %1015
        %v1017 = vsel %vm614, %v1001, -inf
        %1018 = vmax.xlane.f32.xlu0 %v1017
        %v1019 = vpop.xlane.xlu0 %1018
        %v1020 = vsel %vm614, %v1002, -inf
        %1021 = vmax.xlane.f32.xlu0 %v1020
        %v1022 = vpop.xlane.xlu0 %1021
        %v1023 = vsel %vm614, %v1003, -inf
        %1024 = vmax.xlane.f32.xlu0 %v1023
        %v1025 = vpop.xlane.xlu0 %1024
        %v1026 = vsel %vm614, %v1004, -inf
        %1027 = vmax.xlane.f32.xlu0 %v1026
        %v1028 = vpop.xlane.xlu0 %1027
        %v1029 = vsub.f32 %v997, %v1007
        %v1030 = vsub.f32 %v998, %v1010
        %v1031 = vsub.f32 %v999, %v1013
        %v1032 = vsub.f32 %v1000, %v1016
        %v1033 = vsub.f32 %v1001, %v1019
        %v1034 = vsub.f32 %v1002, %v1022
        %v1035 = vsub.f32 %v1003, %v1025
        %v1036 = vsub.f32 %v1004, %v1028
        %v1037 = vmul.f32 %v1029, 1.442695
        %v1038 = vpow.pop %v1037
        %v1039 = vmul.f32 %v1030, 1.442695
        %v1040 = vpow.pop %v1039
        %v1041 = vmul.f32 %v1031, 1.442695
        %v1042 = vpow.pop %v1041
        %v1043 = vmul.f32 %v1032, 1.442695
        %v1044 = vpow.pop %v1043
        %v1045 = vmul.f32 %v1033, 1.442695
        %v1046 = vpow.pop %v1045
        %v1047 = vmul.f32 %v1034, 1.442695
        %v1048 = vpow.pop %v1047
        %v1049 = vmul.f32 %v1035, 1.442695
        %v1050 = vpow.pop %v1049
        %v1051 = vmul.f32 %v1036, 1.442695
        %v1052 = vpow.pop %v1051
        %v1053 = vsel %vm614, %v1038, 0.0
        %1054 = vadd.xlane.f32.xlu0 %v1053
        %v1055 = vpop.xlane.xlu0 %1054
        %v1056 = vsel %vm614, %v1040, 0.0
        %1057 = vadd.xlane.f32.xlu0 %v1056
        %v1058 = vpop.xlane.xlu0 %1057
        %v1059 = vsel %vm614, %v1042, 0.0
        %1060 = vadd.xlane.f32.xlu0 %v1059
        %v1061 = vpop.xlane.xlu0 %1060
        %v1062 = vsel %vm614, %v1044, 0.0
        %1063 = vadd.xlane.f32.xlu0 %v1062
        %v1064 = vpop.xlane.xlu0 %1063
        %v1065 = vsel %vm614, %v1046, 0.0
        %1066 = vadd.xlane.f32.xlu0 %v1065
        %v1067 = vpop.xlane.xlu0 %1066
        %v1068 = vsel %vm614, %v1048, 0.0
        %1069 = vadd.xlane.f32.xlu0 %v1068
        %v1070 = vpop.xlane.xlu0 %1069
        %v1071 = vsel %vm614, %v1050, 0.0
        %1072 = vadd.xlane.f32.xlu0 %v1071
        %v1073 = vpop.xlane.xlu0 %1072
        %v1074 = vsel %vm614, %v1052, 0.0
        %1075 = vadd.xlane.f32.xlu0 %v1074
        %v1076 = vpop.xlane.xlu0 %1075
        %v1077 = vrcp.pop %v1055
        %v1078 = vrcp.pop %v1058
        %v1079 = vrcp.pop %v1061
        %v1080 = vrcp.pop %v1064
        %v1081 = vrcp.pop %v1067
        %v1082 = vrcp.pop %v1070
        %v1083 = vrcp.pop %v1073
        %v1084 = vrcp.pop %v1076
        %v1085 = vmul.f32 %v1038, %v1077
        %v1086 = vmul.f32 %v1040, %v1078
        %v1087 = vmul.f32 %v1042, %v1079
        %v1088 = vmul.f32 %v1044, %v1080
        %v1089 = vmul.f32 %v1046, %v1081
        %v1090 = vmul.f32 %v1048, %v1082
        %v1091 = vmul.f32 %v1050, %v1083
        %v1092 = vmul.f32 %v1052, %v1084
        %v1093 = vpack.c.bf16 %v1085, %v1085
        %v1094 = vpack.c.bf16 %v1086, %v1086
        %v1095 = vpack.c.bf16 %v1087, %v1087
        %v1096 = vpack.c.bf16 %v1088, %v1088
        %v1097 = vpack.c.bf16 %v1089, %v1089
        %v1098 = vpack.c.bf16 %v1090, %v1090
        %v1099 = vpack.c.bf16 %v1091, %v1091
        %v1100 = vpack.c.bf16 %v1092, %v1092
        %1101 = vrot.lane.b32.xlu0 %v597, 64
        %v1102 = vpop.permute.xlu0 %1101
        %v1104 = vsel %vm614, %v1093, 0
        %vm1106 = vcmask 1043456
        %v1108 = vsel %vm1106, %v1102, 0
        %1110 = vmatprep.subr.bf16.mxu0 0
        %1111 = vmatpush1.bf16.msra.mxu0 0
        %1112 = vmatprep.subr.bf16.mxu0 0
        %1113 = vmatpush1.bf16.msra.mxu0 0
        %1114 = vmatprep.subr.bf16.mxu0 0
        %1115 = vmatpush1.bf16.msra.mxu0 0
        %1116 = vmatprep.subr.bf16.mxu0 0
        %1117 = vmatpush1.bf16.msra.mxu0 0
        %1118 = vmatprep.subr.bf16.mxu0 0
        %1119 = vmatpush1.bf16.msra.mxu0 0
        %1120 = vmatprep.subr.bf16.mxu0 0
        %1121 = vmatpush1.bf16.msra.mxu0 0
        %1122 = vmatprep.subr.bf16.mxu0 0
        %1123 = vmatpush1.bf16.msra.mxu0 0
        %1124 = vmatprep.subr.bf16.mxu0 0
        %1125 = vmatpush1.bf16.msra.mxu0 %v1108
        %1126 = vmatprep.subr.bf16.mxu0 0
        %1127 = vmatpush2.bf16.msra.mxu0 0
        %1128 = vmatprep.subr.bf16.mxu0 0
        %1129 = vmatpush2.bf16.msra.mxu0 0
        %1130 = vmatprep.subr.bf16.mxu0 0
        %1131 = vmatpush2.bf16.msra.mxu0 0
        %1132 = vmatprep.subr.bf16.mxu0 0
        %1133 = vmatpush2.bf16.msra.mxu0 0
        %1134 = vmatprep.subr.bf16.mxu0 0
        %1135 = vmatpush2.bf16.msra.mxu0 0
        %1136 = vmatprep.subr.bf16.mxu0 0
        %1137 = vmatpush2.bf16.msra.mxu0 0
        %1138 = vmatprep.subr.bf16.mxu0 0
        %1139 = vmatpush2.bf16.msra.mxu0 0
        %1140 = vmatprep.subr.bf16.mxu0 0
        %1141 = vmatpush2.bf16.msra.mxu0 0
        %1142 = vmatprep.mubr.bf16.mxu0 0
        %1143 = vmatmul.mubr.bf16.gmra.mxu0 %v1104
        %v1144 = vpop.f32.mrf.mxu0
        %v1145 = vadd.f32 0.0, %v1144
        %v1146 = vpop.f32.mrf.mxu0
        %v1147 = vpop.f32.mrf.mxu0
        %v1148 = vpop.f32.mrf.mxu0
        %1149 = vdwg.mxu0
        %1150 = vrot.lane.b32.xlu0 %v600, 64
        %v1151 = vpop.permute.xlu0 %1150
        %v1153 = vsel %vm614, %v1094, 0
        %v1156 = vsel %vm1106, %v1151, 0
        %1158 = vmatprep.subr.bf16.mxu0 0
        %1159 = vmatpush1.bf16.msra.mxu0 0
        %1160 = vmatprep.subr.bf16.mxu0 0
        %1161 = vmatpush1.bf16.msra.mxu0 0
        %1162 = vmatprep.subr.bf16.mxu0 0
        %1163 = vmatpush1.bf16.msra.mxu0 0
        %1164 = vmatprep.subr.bf16.mxu0 0
        %1165 = vmatpush1.bf16.msra.mxu0 0
        %1166 = vmatprep.subr.bf16.mxu0 0
        %1167 = vmatpush1.bf16.msra.mxu0 0
        %1168 = vmatprep.subr.bf16.mxu0 0
        %1169 = vmatpush1.bf16.msra.mxu0 0
        %1170 = vmatprep.subr.bf16.mxu0 0
        %1171 = vmatpush1.bf16.msra.mxu0 0
        %1172 = vmatprep.subr.bf16.mxu0 0
        %1173 = vmatpush1.bf16.msra.mxu0 %v1156
        %1174 = vmatprep.subr.bf16.mxu0 0
        %1175 = vmatpush2.bf16.msra.mxu0 0
        %1176 = vmatprep.subr.bf16.mxu0 0
        %1177 = vmatpush2.bf16.msra.mxu0 0
        %1178 = vmatprep.subr.bf16.mxu0 0
        %1179 = vmatpush2.bf16.msra.mxu0 0
        %1180 = vmatprep.subr.bf16.mxu0 0
        %1181 = vmatpush2.bf16.msra.mxu0 0
        %1182 = vmatprep.subr.bf16.mxu0 0
        %1183 = vmatpush2.bf16.msra.mxu0 0
        %1184 = vmatprep.subr.bf16.mxu0 0
        %1185 = vmatpush2.bf16.msra.mxu0 0
        %1186 = vmatprep.subr.bf16.mxu0 0
        %1187 = vmatpush2.bf16.msra.mxu0 0
        %1188 = vmatprep.subr.bf16.mxu0 0
        %1189 = vmatpush2.bf16.msra.mxu0 0
        %1190 = vmatprep.mubr.bf16.mxu0 0
        %1191 = vmatmul.mubr.bf16.gmra.mxu0 %v1153
        %v1192 = vpop.f32.mrf.mxu0
        %v1193 = vadd.f32 0.0, %v1192
        %v1194 = vpop.f32.mrf.mxu0
        %v1195 = vpop.f32.mrf.mxu0
        %v1196 = vpop.f32.mrf.mxu0
        %1197 = vdwg.mxu0
        %1198 = vrot.lane.b32.xlu0 %v602, 64
        %v1199 = vpop.permute.xlu0 %1198
        %v1201 = vsel %vm614, %v1095, 0
        %v1204 = vsel %vm1106, %v1199, 0
        %1206 = vmatprep.subr.bf16.mxu0 0
        %1207 = vmatpush1.bf16.msra.mxu0 0
        %1208 = vmatprep.subr.bf16.mxu0 0
        %1209 = vmatpush1.bf16.msra.mxu0 0
        %1210 = vmatprep.subr.bf16.mxu0 0
        %1211 = vmatpush1.bf16.msra.mxu0 0
        %1212 = vmatprep.subr.bf16.mxu0 0
        %1213 = vmatpush1.bf16.msra.mxu0 0
        %1214 = vmatprep.subr.bf16.mxu0 0
        %1215 = vmatpush1.bf16.msra.mxu0 0
        %1216 = vmatprep.subr.bf16.mxu0 0
        %1217 = vmatpush1.bf16.msra.mxu0 0
        %1218 = vmatprep.subr.bf16.mxu0 0
        %1219 = vmatpush1.bf16.msra.mxu0 0
        %1220 = vmatprep.subr.bf16.mxu0 0
        %1221 = vmatpush1.bf16.msra.mxu0 %v1204
        %1222 = vmatprep.subr.bf16.mxu0 0
        %1223 = vmatpush2.bf16.msra.mxu0 0
        %1224 = vmatprep.subr.bf16.mxu0 0
        %1225 = vmatpush2.bf16.msra.mxu0 0
        %1226 = vmatprep.subr.bf16.mxu0 0
        %1227 = vmatpush2.bf16.msra.mxu0 0
        %1228 = vmatprep.subr.bf16.mxu0 0
        %1229 = vmatpush2.bf16.msra.mxu0 0
        %1230 = vmatprep.subr.bf16.mxu0 0
        %1231 = vmatpush2.bf16.msra.mxu0 0
        %1232 = vmatprep.subr.bf16.mxu0 0
        %1233 = vmatpush2.bf16.msra.mxu0 0
        %1234 = vmatprep.subr.bf16.mxu0 0
        %1235 = vmatpush2.bf16.msra.mxu0 0
        %1236 = vmatprep.subr.bf16.mxu0 0
        %1237 = vmatpush2.bf16.msra.mxu0 0
        %1238 = vmatprep.mubr.bf16.mxu0 0
        %1239 = vmatmul.mubr.bf16.gmra.mxu0 %v1201
        %v1240 = vpop.f32.mrf.mxu0
        %v1241 = vadd.f32 0.0, %v1240
        %v1242 = vpop.f32.mrf.mxu0
        %v1243 = vpop.f32.mrf.mxu0
        %v1244 = vpop.f32.mrf.mxu0
        %1245 = vdwg.mxu0
        %1246 = vrot.lane.b32.xlu0 %v604, 64
        %v1247 = vpop.permute.xlu0 %1246
        %v1249 = vsel %vm614, %v1096, 0
        %v1252 = vsel %vm1106, %v1247, 0
        %1254 = vmatprep.subr.bf16.mxu0 0
        %1255 = vmatpush1.bf16.msra.mxu0 0
        %1256 = vmatprep.subr.bf16.mxu0 0
        %1257 = vmatpush1.bf16.msra.mxu0 0
        %1258 = vmatprep.subr.bf16.mxu0 0
        %1259 = vmatpush1.bf16.msra.mxu0 0
        %1260 = vmatprep.subr.bf16.mxu0 0
        %1261 = vmatpush1.bf16.msra.mxu0 0
        %1262 = vmatprep.subr.bf16.mxu0 0
        %1263 = vmatpush1.bf16.msra.mxu0 0
        %1264 = vmatprep.subr.bf16.mxu0 0
        %1265 = vmatpush1.bf16.msra.mxu0 0
        %1266 = vmatprep.subr.bf16.mxu0 0
        %1267 = vmatpush1.bf16.msra.mxu0 0
        %1268 = vmatprep.subr.bf16.mxu0 0
        %1269 = vmatpush1.bf16.msra.mxu0 %v1252
        %1270 = vmatprep.subr.bf16.mxu0 0
        %1271 = vmatpush2.bf16.msra.mxu0 0
        %1272 = vmatprep.subr.bf16.mxu0 0
        %1273 = vmatpush2.bf16.msra.mxu0 0
        %1274 = vmatprep.subr.bf16.mxu0 0
        %1275 = vmatpush2.bf16.msra.mxu0 0
        %1276 = vmatprep.subr.bf16.mxu0 0
        %1277 = vmatpush2.bf16.msra.mxu0 0
        %1278 = vmatprep.subr.bf16.mxu0 0
        %1279 = vmatpush2.bf16.msra.mxu0 0
        %1280 = vmatprep.subr.bf16.mxu0 0
        %1281 = vmatpush2.bf16.msra.mxu0 0
        %1282 = vmatprep.subr.bf16.mxu0 0
        %1283 = vmatpush2.bf16.msra.mxu0 0
        %1284 = vmatprep.subr.bf16.mxu0 0
        %1285 = vmatpush2.bf16.msra.mxu0 0
        %1286 = vmatprep.mubr.bf16.mxu0 0
        %1287 = vmatmul.mubr.bf16.gmra.mxu0 %v1249
        %v1288 = vpop.f32.mrf.mxu0
        %v1289 = vadd.f32 0.0, %v1288
        %v1290 = vpop.f32.mrf.mxu0
        %v1291 = vpop.f32.mrf.mxu0
        %v1292 = vpop.f32.mrf.mxu0
        %1293 = vdwg.mxu0
        %1294 = vrot.lane.b32.xlu0 %v605, 64
        %v1295 = vpop.permute.xlu0 %1294
        %v1297 = vsel %vm614, %v1097, 0
        %v1300 = vsel %vm1106, %v1295, 0
        %1302 = vmatprep.subr.bf16.mxu0 0
        %1303 = vmatpush1.bf16.msra.mxu0 0
        %1304 = vmatprep.subr.bf16.mxu0 0
        %1305 = vmatpush1.bf16.msra.mxu0 0
        %1306 = vmatprep.subr.bf16.mxu0 0
        %1307 = vmatpush1.bf16.msra.mxu0 0
        %1308 = vmatprep.subr.bf16.mxu0 0
        %1309 = vmatpush1.bf16.msra.mxu0 0
        %1310 = vmatprep.subr.bf16.mxu0 0
        %1311 = vmatpush1.bf16.msra.mxu0 0
        %1312 = vmatprep.subr.bf16.mxu0 0
        %1313 = vmatpush1.bf16.msra.mxu0 0
        %1314 = vmatprep.subr.bf16.mxu0 0
        %1315 = vmatpush1.bf16.msra.mxu0 0
        %1316 = vmatprep.subr.bf16.mxu0 0
        %1317 = vmatpush1.bf16.msra.mxu0 %v1300
        %1318 = vmatprep.subr.bf16.mxu0 0
        %1319 = vmatpush2.bf16.msra.mxu0 0
        %1320 = vmatprep.subr.bf16.mxu0 0
        %1321 = vmatpush2.bf16.msra.mxu0 0
        %1322 = vmatprep.subr.bf16.mxu0 0
        %1323 = vmatpush2.bf16.msra.mxu0 0
        %1324 = vmatprep.subr.bf16.mxu0 0
        %1325 = vmatpush2.bf16.msra.mxu0 0
        %1326 = vmatprep.subr.bf16.mxu0 0
        %1327 = vmatpush2.bf16.msra.mxu0 0
        %1328 = vmatprep.subr.bf16.mxu0 0
        %1329 = vmatpush2.bf16.msra.mxu0 0
        %1330 = vmatprep.subr.bf16.mxu0 0
        %1331 = vmatpush2.bf16.msra.mxu0 0
        %1332 = vmatprep.subr.bf16.mxu0 0
        %1333 = vmatpush2.bf16.msra.mxu0 0
        %1334 = vmatprep.mubr.bf16.mxu0 0
        %1335 = vmatmul.mubr.bf16.gmra.mxu0 %v1297
        %v1336 = vpop.f32.mrf.mxu0
        %v1337 = vadd.f32 0.0, %v1336
        %v1338 = vpop.f32.mrf.mxu0
        %v1339 = vpop.f32.mrf.mxu0
        %v1340 = vpop.f32.mrf.mxu0
        %1341 = vdwg.mxu0
        %1342 = vrot.lane.b32.xlu0 %v607, 64
        %v1343 = vpop.permute.xlu0 %1342
        %v1345 = vsel %vm614, %v1098, 0
        %v1348 = vsel %vm1106, %v1343, 0
        %1350 = vmatprep.subr.bf16.mxu0 0
        %1351 = vmatpush1.bf16.msra.mxu0 0
        %1352 = vmatprep.subr.bf16.mxu0 0
        %1353 = vmatpush1.bf16.msra.mxu0 0
        %1354 = vmatprep.subr.bf16.mxu0 0
        %1355 = vmatpush1.bf16.msra.mxu0 0
        %1356 = vmatprep.subr.bf16.mxu0 0
        %1357 = vmatpush1.bf16.msra.mxu0 0
        %1358 = vmatprep.subr.bf16.mxu0 0
        %1359 = vmatpush1.bf16.msra.mxu0 0
        %1360 = vmatprep.subr.bf16.mxu0 0
        %1361 = vmatpush1.bf16.msra.mxu0 0
        %1362 = vmatprep.subr.bf16.mxu0 0
        %1363 = vmatpush1.bf16.msra.mxu0 0
        %1364 = vmatprep.subr.bf16.mxu0 0
        %1365 = vmatpush1.bf16.msra.mxu0 %v1348
        %1366 = vmatprep.subr.bf16.mxu0 0
        %1367 = vmatpush2.bf16.msra.mxu0 0
        %1368 = vmatprep.subr.bf16.mxu0 0
        %1369 = vmatpush2.bf16.msra.mxu0 0
        %1370 = vmatprep.subr.bf16.mxu0 0
        %1371 = vmatpush2.bf16.msra.mxu0 0
        %1372 = vmatprep.subr.bf16.mxu0 0
        %1373 = vmatpush2.bf16.msra.mxu0 0
        %1374 = vmatprep.subr.bf16.mxu0 0
        %1375 = vmatpush2.bf16.msra.mxu0 0
        %1376 = vmatprep.subr.bf16.mxu0 0
        %1377 = vmatpush2.bf16.msra.mxu0 0
        %1378 = vmatprep.subr.bf16.mxu0 0
        %1379 = vmatpush2.bf16.msra.mxu0 0
        %1380 = vmatprep.subr.bf16.mxu0 0
        %1381 = vmatpush2.bf16.msra.mxu0 0
        %1382 = vmatprep.mubr.bf16.mxu0 0
        %1383 = vmatmul.mubr.bf16.gmra.mxu0 %v1345
        %v1384 = vpop.f32.mrf.mxu0
        %v1385 = vadd.f32 0.0, %v1384
        %v1386 = vpop.f32.mrf.mxu0
        %v1387 = vpop.f32.mrf.mxu0
        %v1388 = vpop.f32.mrf.mxu0
        %1389 = vdwg.mxu0
        %1390 = vrot.lane.b32.xlu0 %v609, 64
        %v1391 = vpop.permute.xlu0 %1390
        %v1393 = vsel %vm614, %v1099, 0
        %v1396 = vsel %vm1106, %v1391, 0
        %1398 = vmatprep.subr.bf16.mxu0 0
        %1399 = vmatpush1.bf16.msra.mxu0 0
        %1400 = vmatprep.subr.bf16.mxu0 0
        %1401 = vmatpush1.bf16.msra.mxu0 0
        %1402 = vmatprep.subr.bf16.mxu0 0
        %1403 = vmatpush1.bf16.msra.mxu0 0
        %1404 = vmatprep.subr.bf16.mxu0 0
        %1405 = vmatpush1.bf16.msra.mxu0 0
        %1406 = vmatprep.subr.bf16.mxu0 0
        %1407 = vmatpush1.bf16.msra.mxu0 0
        %1408 = vmatprep.subr.bf16.mxu0 0
        %1409 = vmatpush1.bf16.msra.mxu0 0
        %1410 = vmatprep.subr.bf16.mxu0 0
        %1411 = vmatpush1.bf16.msra.mxu0 0
        %1412 = vmatprep.subr.bf16.mxu0 0
        %1413 = vmatpush1.bf16.msra.mxu0 %v1396
        %1414 = vmatprep.subr.bf16.mxu0 0
        %1415 = vmatpush2.bf16.msra.mxu0 0
        %1416 = vmatprep.subr.bf16.mxu0 0
        %1417 = vmatpush2.bf16.msra.mxu0 0
        %1418 = vmatprep.subr.bf16.mxu0 0
        %1419 = vmatpush2.bf16.msra.mxu0 0
        %1420 = vmatprep.subr.bf16.mxu0 0
        %1421 = vmatpush2.bf16.msra.mxu0 0
        %1422 = vmatprep.subr.bf16.mxu0 0
        %1423 = vmatpush2.bf16.msra.mxu0 0
        %1424 = vmatprep.subr.bf16.mxu0 0
        %1425 = vmatpush2.bf16.msra.mxu0 0
        %1426 = vmatprep.subr.bf16.mxu0 0
        %1427 = vmatpush2.bf16.msra.mxu0 0
        %1428 = vmatprep.subr.bf16.mxu0 0
        %1429 = vmatpush2.bf16.msra.mxu0 0
        %1430 = vmatprep.mubr.bf16.mxu0 0
        %1431 = vmatmul.mubr.bf16.gmra.mxu0 %v1393
        %v1432 = vpop.f32.mrf.mxu0
        %v1433 = vadd.f32 0.0, %v1432
        %v1434 = vpop.f32.mrf.mxu0
        %v1435 = vpop.f32.mrf.mxu0
        %v1436 = vpop.f32.mrf.mxu0
        %1437 = vdwg.mxu0
        %1438 = vrot.lane.b32.xlu0 %v611, 64
        %v1439 = vpop.permute.xlu0 %1438
        %v1441 = vsel %vm614, %v1100, 0
        %v1444 = vsel %vm1106, %v1439, 0
        %1446 = vmatprep.subr.bf16.mxu0 0
        %1447 = vmatpush1.bf16.msra.mxu0 0
        %1448 = vmatprep.subr.bf16.mxu0 0
        %1449 = vmatpush1.bf16.msra.mxu0 0
        %1450 = vmatprep.subr.bf16.mxu0 0
        %1451 = vmatpush1.bf16.msra.mxu0 0
        %1452 = vmatprep.subr.bf16.mxu0 0
        %1453 = vmatpush1.bf16.msra.mxu0 0
        %1454 = vmatprep.subr.bf16.mxu0 0
        %1455 = vmatpush1.bf16.msra.mxu0 0
        %1456 = vmatprep.subr.bf16.mxu0 0
        %1457 = vmatpush1.bf16.msra.mxu0 0
        %1458 = vmatprep.subr.bf16.mxu0 0
        %1459 = vmatpush1.bf16.msra.mxu0 0
        %1460 = vmatprep.subr.bf16.mxu0 0
        %1461 = vmatpush1.bf16.msra.mxu0 %v1444
        %1462 = vmatprep.subr.bf16.mxu0 0
        %1463 = vmatpush2.bf16.msra.mxu0 0
        %1464 = vmatprep.subr.bf16.mxu0 0
        %1465 = vmatpush2.bf16.msra.mxu0 0
        %1466 = vmatprep.subr.bf16.mxu0 0
        %1467 = vmatpush2.bf16.msra.mxu0 0
        %1468 = vmatprep.subr.bf16.mxu0 0
        %1469 = vmatpush2.bf16.msra.mxu0 0
        %1470 = vmatprep.subr.bf16.mxu0 0
        %1471 = vmatpush2.bf16.msra.mxu0 0
        %1472 = vmatprep.subr.bf16.mxu0 0
        %1473 = vmatpush2.bf16.msra.mxu0 0
        %1474 = vmatprep.subr.bf16.mxu0 0
        %1475 = vmatpush2.bf16.msra.mxu0 0
        %1476 = vmatprep.subr.bf16.mxu0 0
        %1477 = vmatpush2.bf16.msra.mxu0 0
        %1478 = vmatprep.mubr.bf16.mxu0 0
        %1479 = vmatmul.mubr.bf16.gmra.mxu0 %v1441
        %v1480 = vpop.f32.mrf.mxu0
        %v1481 = vadd.f32 0.0, %v1480
        %v1482 = vpop.f32.mrf.mxu0
        %v1483 = vpop.f32.mrf.mxu0
        %v1484 = vpop.f32.mrf.mxu0
        %1485 = vdwg.mxu0
        %1487 = vrot.lane.b32.xlu0 %v1193, 8
        %v1488 = vpop.permute.xlu0 %1487
        %1491 = vrot.lane.b32.xlu0 %v1241, 16
        %v1492 = vpop.permute.xlu0 %1491
        %1495 = vrot.lane.b32.xlu0 %v1289, 24
        %v1496 = vpop.permute.xlu0 %1495
        %v1498 = vsel %vm614, %v1145, %v1488
        %vm1499 = vcmask 130048
        %v1500 = vsel %vm1499, %v1498, %v1492
        %vm1501 = vcmask 195584
        %v1502 = vsel %vm1501, %v1500, %v1496
        %1504 = vrot.lane.b32.xlu0 %v1385, 8
        %v1505 = vpop.permute.xlu0 %1504
        %1508 = vrot.lane.b32.xlu0 %v1433, 16
        %v1509 = vpop.permute.xlu0 %1508
        %1512 = vrot.lane.b32.xlu0 %v1481, 24
        %v1513 = vpop.permute.xlu0 %1512
        %v1515 = vsel %vm614, %v1337, %v1505
        %v1516 = vsel %vm1499, %v1515, %v1509
        %v1517 = vsel %vm1501, %v1516, %v1513
        %v1518 = vadd.f32 %v485, %v1502
        %v1519 = vadd.f32 %v486, %v1517
        %v1520 = vld [vmem:[%s457] sm:$0x1]
        %v1521 = vld [vmem:[%s457 + $0x1] sm:$0x1]
        %v1522 = vsel %vm489, %v1518, 0.0
        %1523 = vadd.xlane.f32.xlu0 %v1522
        %v1524 = vpop.xlane.xlu0 %1523
        %v1525 = vsel %vm489, %v1519, 0.0
        %1526 = vadd.xlane.f32.xlu0 %v1525
        %v1527 = vpop.xlane.xlu0 %1526
        %v1528 = vmul.f32 %v1524, %v496
        %v1529 = vmul.f32 %v1527, %v496
        %v1530 = vsub.f32 %v1518, %v1528
        %v1531 = vsub.f32 %v1519, %v1529
        %v1532 = vmul.f32 %v1530, %v1530
        %v1533 = vmul.f32 %v1531, %v1531
        %v1534 = vsel %vm489, %v1532, 0.0
        %1535 = vadd.xlane.f32.xlu0 %v1534
        %v1536 = vpop.xlane.xlu0 %1535
        %v1537 = vsel %vm489, %v1533, 0.0
        %1538 = vadd.xlane.f32.xlu0 %v1537
        %v1539 = vpop.xlane.xlu0 %1538
        %v1540 = vmul.f32 %v1536, %v496
        %v1541 = vmul.f32 %v1539, %v496
        %v1542 = vadd.f32 %v1540, 1e-05
        %v1543 = vadd.f32 %v1541, 1e-05
        %v1544 = vrsqrt.pop %v1542
        %v1545 = vrsqrt.pop %v1543
        %v1546 = vmul.f32 %v1530, %v1544
        %v1547 = vmul.f32 %v1531, %v1545
        %v1548 = vlaneseq
        %v1549 = vshrl.u32 %v1548, 7
        %v1550 = vsub.s32 0, %v1549
        %v1551 = vrot.slane %v1520, %v1550
        %v1552 = vmul.f32 %v1546, %v1551
        %v1553 = vmul.f32 %v1547, %v1551
        %v1554 = vlaneseq
        %v1555 = vshrl.u32 %v1554, 7
        %v1556 = vsub.s32 0, %v1555
        %v1557 = vrot.slane %v1521, %v1556
        %v1558 = vadd.f32 %v1552, %v1557
        %v1559 = vadd.f32 %v1553, %v1557
        %v1560 = vpack.c.bf16 %v1559, %v1558
        %v1561 = vld [vmem:[%s462] sm:$0xf]
        %v1562 = vld [vmem:[%s462 + $0x4] sm:$0xf]
        %v1563 = vld [vmem:[%s462 + $0x8] sm:$0xf]
        %v1564 = vld [vmem:[%s462 + $0xc] sm:$0xf]
        %v1565 = vld [vmem:[%s465] sm:$0x1]
        %v1567 = vlaneseq
        %v1568 = vshrl.u32 %v1567, 7
        %v1569 = vsub.s32 0, %v1568
        %v1570 = vrot.slane %v1565, %v1569
        %v1576 = vunpack.c.l.b16 %v1561
        %v1577 = vunpack.c.l.b16 %v1562
        %v1578 = vunpack.c.l.b16 %v1563
        %v1579 = vunpack.c.l.b16 %v1564
        %v1580 = vpack.c.b16 %v1577, %v1576
        %v1581 = vpack.c.b16 %v1579, %v1578
        %v1585 = vsel %vm489, %v1560, 0
        %1587 = vmatprep.subr.bf16.mxu0 0
        %1588 = vmatpush1.bf16.msra.mxu0 0
        %1589 = vmatprep.subr.bf16.mxu0 0
        %1590 = vmatpush1.bf16.msra.mxu0 0
        %1591 = vmatprep.subr.bf16.mxu0 0
        %1592 = vmatpush1.bf16.msra.mxu0 0
        %1593 = vmatprep.subr.bf16.mxu0 0
        %1594 = vmatpush1.bf16.msra.mxu0 0
        %1595 = vmatprep.subr.bf16.mxu0 0
        %1596 = vmatpush1.bf16.msra.mxu0 0
        %1597 = vmatprep.subr.bf16.mxu0 0
        %1598 = vmatpush1.bf16.msra.mxu0 0
        %1599 = vmatprep.subr.bf16.mxu0 0
        %1600 = vmatpush1.bf16.msra.mxu0 %v1581
        %1601 = vmatprep.subr.bf16.mxu0 0
        %1602 = vmatpush1.bf16.msra.mxu0 %v1580
        %1603 = vmatprep.subr.bf16.mxu0 0
        %1604 = vmatpush2.bf16.msra.mxu0 0
        %1605 = vmatprep.subr.bf16.mxu0 0
        %1606 = vmatpush2.bf16.msra.mxu0 0
        %1607 = vmatprep.subr.bf16.mxu0 0
        %1608 = vmatpush2.bf16.msra.mxu0 0
        %1609 = vmatprep.subr.bf16.mxu0 0
        %1610 = vmatpush2.bf16.msra.mxu0 0
        %1611 = vmatprep.subr.bf16.mxu0 0
        %1612 = vmatpush2.bf16.msra.mxu0 0
        %1613 = vmatprep.subr.bf16.mxu0 0
        %1614 = vmatpush2.bf16.msra.mxu0 0
        %1615 = vmatprep.subr.bf16.mxu0 0
        %1616 = vmatpush2.bf16.msra.mxu0 0
        %1617 = vmatprep.subr.bf16.mxu0 0
        %1618 = vmatpush2.bf16.msra.mxu0 0
        %1619 = vmatprep.mubr.bf16.mxu0 0
        %1620 = vmatmul.mubr.bf16.gmra.mxu0 %v1585
        %v1621 = vpop.f32.mrf.mxu0
        %v1622 = vadd.f32 %v1570, %v1621
        %v1623 = vpop.f32.mrf.mxu0
        %v1624 = vpop.f32.mrf.mxu0
        %v1625 = vadd.f32 %v1570, %v1624
        %v1626 = vpop.f32.mrf.mxu0
        %1627 = vdwg.mxu0
        %v1628 = vmul.f32 %v1622, 0.5
        %v1629 = vmul.f32 %v1625, 0.5
        %v1630 = vmul.f32 %v1622, 0.70710677
        %v1631 = vmul.f32 %v1625, 0.70710677
        %v1632 = verf.f32.pop %v1630
        %v1633 = verf.f32.pop %v1631
        %v1634 = vadd.f32 %v1632, 1.0
        %v1635 = vadd.f32 %v1633, 1.0
        %v1636 = vmul.f32 %v1628, %v1634
        %v1637 = vmul.f32 %v1629, %v1635
        %v1638 = vpack.c.bf16 %v1637, %v1636
        %v1639 = vld [vmem:[%s470] sm:$0xf]
        %v1640 = vld [vmem:[%s470 + $0x4] sm:$0xf]
        %v1641 = vld [vmem:[%s470 + $0x8] sm:$0xf]
        %v1642 = vld [vmem:[%s470 + $0xc] sm:$0xf]
        %v1643 = vld [vmem:[%s470 + $0x10] sm:$0xf]
        %v1644 = vld [vmem:[%s470 + $0x14] sm:$0xf]
        %v1645 = vld [vmem:[%s470 + $0x18] sm:$0xf]
        %v1646 = vld [vmem:[%s470 + $0x1c] sm:$0xf]
        %v1647 = vld [vmem:[%s473] sm:$0x1]
        %v1649 = vlaneseq
        %v1650 = vshrl.u32 %v1649, 7
        %v1651 = vsub.s32 0, %v1650
        %v1652 = vrot.slane %v1647, %v1651
        %v1662 = vunpack.c.l.b16 %v1639
        %v1663 = vunpack.c.l.b16 %v1640
        %v1664 = vunpack.c.l.b16 %v1641
        %v1665 = vunpack.c.l.b16 %v1642
        %v1666 = vunpack.c.l.b16 %v1643
        %v1667 = vunpack.c.l.b16 %v1644
        %v1668 = vunpack.c.l.b16 %v1645
        %v1669 = vunpack.c.l.b16 %v1646
        %v1670 = vpack.c.b16 %v1663, %v1662
        %v1671 = vpack.c.b16 %v1665, %v1664
        %v1672 = vpack.c.b16 %v1667, %v1666
        %v1673 = vpack.c.b16 %v1669, %v1668
        %vm1678 = vcmask 523264
        %v1680 = vsel %vm1678, %v1638, 0
        %1682 = vmatprep.subr.bf16.mxu0 0
        %1683 = vmatpush1.bf16.msra.mxu0 0
        %1684 = vmatprep.subr.bf16.mxu0 0
        %1685 = vmatpush1.bf16.msra.mxu0 0
        %1686 = vmatprep.subr.bf16.mxu0 0
        %1687 = vmatpush1.bf16.msra.mxu0 0
        %1688 = vmatprep.subr.bf16.mxu0 0
        %1689 = vmatpush1.bf16.msra.mxu0 0
        %1690 = vmatprep.subr.bf16.mxu0 0
        %1691 = vmatpush1.bf16.msra.mxu0 %v1673
        %1692 = vmatprep.subr.bf16.mxu0 0
        %1693 = vmatpush1.bf16.msra.mxu0 %v1672
        %1694 = vmatprep.subr.bf16.mxu0 0
        %1695 = vmatpush1.bf16.msra.mxu0 %v1671
        %1696 = vmatprep.subr.bf16.mxu0 0
        %1697 = vmatpush1.bf16.msra.mxu0 %v1670
        %1698 = vmatprep.subr.bf16.mxu0 0
        %1699 = vmatpush2.bf16.msra.mxu0 0
        %1700 = vmatprep.subr.bf16.mxu0 0
        %1701 = vmatpush2.bf16.msra.mxu0 0
        %1702 = vmatprep.subr.bf16.mxu0 0
        %1703 = vmatpush2.bf16.msra.mxu0 0
        %1704 = vmatprep.subr.bf16.mxu0 0
        %1705 = vmatpush2.bf16.msra.mxu0 0
        %1706 = vmatprep.subr.bf16.mxu0 0
        %1707 = vmatpush2.bf16.msra.mxu0 0
        %1708 = vmatprep.subr.bf16.mxu0 0
        %1709 = vmatpush2.bf16.msra.mxu0 0
        %1710 = vmatprep.subr.bf16.mxu0 0
        %1711 = vmatpush2.bf16.msra.mxu0 0
        %1712 = vmatprep.subr.bf16.mxu0 0
        %1713 = vmatpush2.bf16.msra.mxu0 0
        %1714 = vmatprep.mubr.bf16.mxu0 0
        %1715 = vmatmul.mubr.bf16.gmra.mxu0 %v1680
        %v1716 = vpop.f32.mrf.mxu0
        %v1717 = vadd.f32 %v1652, %v1716
        %v1718 = vpop.f32.mrf.mxu0
        %v1719 = vpop.f32.mrf.mxu0
        %v1720 = vadd.f32 %v1652, %v1719
        %v1721 = vpop.f32.mrf.mxu0
        %1722 = vdwg.mxu0
        %v1723 = vadd.f32 %v1518, %v1717
        %v1724 = vadd.f32 %v1519, %v1720
        %1725 = vst.msk [vmem:[#allocation2] sm:$0xff] %vm489, %v1723
        %1726 = vst.msk [vmem:[#allocation2 + $0x8] sm:$0xff] %vm489, %v1724
        // Predicated region
        $region61: #{transformer_encoder.1} parent=55 // pred_check
          %p1727 = pneg %p285
        $region62: #{transformer_encoder.1} parent=55 // pred_check_branch
          %1729 = sbr.rel (%p1727) target = $region64
        $region63: #{transformer_encoder.1} parent=55 // pred_region
          %s1730 = smul.u32 2, %s25
          %s1732 = ssub.s32 256, 256
          %1733 = vsyncadd [#allocation3], %s1732
          %s1734 = smul.addr %s1730, 128
          %s1735 = scalar_lea.hbm %s9, %s1734
          %s1736 = sshll.u32 [#allocation2], 4
          %s1737 = int_to_ptr.vmem [resolvable:$true] %s1736
          %1742 = dma.vmem_to_hbm [thread:$0]  %s1737, 256, %s1735, [#allocation3], 128, 128, 8
        $region64: #{transformer_encoder.1} parent=55 // pred_fallthru
          _
        // Predicated region
        $region65: #{transformer_encoder.1} parent=55 // pred_check
          %p1743 = pneg %p285
        $region66: #{transformer_encoder.1} parent=55 // pred_check_branch
          %1745 = sbr.rel (%p1743) target = $region68
        $region67: #{transformer_encoder.1} parent=55 // pred_region
          %1746 = dma.done [#allocation3], 256
        $region68: #{transformer_encoder.1} parent=55 // pred_fallthru
          _
      $region56: #{transformer_encoder.1} parent=5 // pred_fallthru
        _
      %p1747 = scmp.le.s32.totalorder 2, %s16
      // Predicated region
      $region69: #{transformer_encoder.1} parent=5 // pred_check
        %p1748 = pneg %p1747
      $region70: #{transformer_encoder.1} parent=5 // pred_check_branch
        %1750 = sbr.rel (%p1748) target = $region72
      $region71: #{transformer_encoder.1} parent=5 // pred_region
        %s1751 = ssub.s32 %s16, 2
      $region72: #{transformer_encoder.1} parent=5 // pred_fallthru
        _
    $region6: #{transformer_encoder.1} parent=1 // loop_footer
      %s20 = sadd.s32 1, %s16
    $region7: #{transformer_encoder.1} parent=1 // loop_footer_branch
      %15 = sbr.rel target = $region3
    $region8: #{transformer_encoder.1} parent=1 // loop_exit
      _
    %1752 = vsyncpa [#allocation3], 1
    %s1753 = scalar_lea.sflag [#allocation3], 1
    %1754 = vsyncpa %s1753, 1

</llo_original>
